<compile_context>
chip_gen: v5e
topology: v5e:2x2
jax: 0.10.0
libtpu: 0.0.40
codegen_flags: <defaults>
</compile_context>

<pallas_src>
import functools

import jax
import jax.numpy as jnp
from jax.experimental import pallas as pl
from jax.experimental.pallas import tpu as pltpu


def _round_up(x, m):
    return (x + m - 1) // m * m


def _vmem_capacity_bytes():
    """Per-TensorCore VMEM capacity; conservative 64 MiB (v7x) fallback."""
    try:
        info = pltpu.get_tpu_info()
        cap = getattr(info, "vmem_capacity_bytes", None)
        if cap:
            return int(cap)
    except Exception:
        pass
    return 64 * 1024 * 1024


def _separable_cbr_kernel(xm_ref, xh_ref, wdw_ref, wpw_ref, p_ref, o_ref, xs_ref, *,
                          kSize, stride, tr, wo, wo8, cin, cout, mxu_bf16):
    """One (batch, output-row-tile) grid step.

    xm_ref : (tr*stride, Wp8, Cin)  non-overlapping main input rows (NHWC, true Cin)
    xh_ref : (halo,      Wp8, Cin)  per-tile halo rows (tiny)
    wdw_ref: (k, k, Cin)            depthwise weights
    wpw_ref: (Cp, Cop)              pointwise (1x1) weights (weights-only channel pad)
    p_ref  : (3, Cout)              [bn_scale; bn_shift; prelu_alpha]
    o_ref  : (tr, Wo, Cout)         true-sized output tile (no channel / width padding)
    xs_ref : (tr_in, Wp8, Cin)      VMEM scratch unifying main + halo rows
    """
    trs = tr * stride
    tr_in = (tr - 1) * stride + kSize
    cp, cop = wpw_ref.shape

    # ---- unify main + halo rows in VMEM (no halo duplication in HBM) ----
    n_main = min(trs, tr_in)
    xs_ref[pl.ds(0, n_main)] = xm_ref[pl.ds(0, n_main)]
    n_halo = tr_in - n_main
    if n_halo > 0:
        xs_ref[pl.ds(n_main, n_halo)] = xh_ref[pl.ds(0, n_halo)]

    # ---- depthwise conv: k*k shifted (strided) taps accumulated in f32 on the VPU ----
    st = stride if stride > 1 else None
    wdw = wdw_ref[...].astype(jnp.float32)                      # (k, k, Cin)
    acc = jnp.zeros((tr, wo8, cin), jnp.float32)
    for kh in range(kSize):
        for kw in range(kSize):
            patch = xs_ref[pl.ds(kh, tr, st), pl.ds(kw, wo8, st), :]
            acc = acc + patch.astype(jnp.float32) * wdw[kh, kw]

    # ---- pointwise 1x1 conv on the MXU (channels zero-padded to 128 lanes in VMEM only) ----
    if cp > cin:
        acc = jnp.concatenate(
            [acc, jnp.zeros((tr, wo8, cp - cin), jnp.float32)], axis=-1)
    mm_dtype = jnp.bfloat16 if mxu_bf16 else jnp.float32
    lhs = acc.reshape(tr * wo8, cp).astype(mm_dtype)            # free relayout: wo8 % 8 == 0
    y = jnp.dot(lhs, wpw_ref[...], preferred_element_type=jnp.float32)   # (tr*wo8, Cop)
    y = y.reshape(tr, wo8, cop)[:, :wo, :cout]                  # drop compute-only padding

    # ---- folded BatchNorm (inference) + PReLU epilogue ----
    params = p_ref[...]                                         # (3, Cout)
    y = y * params[0] + params[1]
    y = jnp.where(y > 0.0, y, params[2] * y)
    o_ref[...] = y.astype(o_ref.dtype)


def _vmem_bytes(tr, *, kSize, stride, wo, wo8, wp8, cin, cout, cp, cop, halo_rows,
                mxu_bf16):
    """Conservative per-step VMEM estimate: double-buffered blocks, minor dims padded
    to full (8,128) vreg tiles, and all in-kernel intermediates included."""
    r8 = lambda v: _round_up(max(v, 1), 8)
    lane = lambda c: _round_up(max(c, 1), 128)
    f32 = 4
    wsz = 2 if mxu_bf16 else 4
    trs = tr * stride
    tr_in = (tr - 1) * stride + kSize
    in_row = r8(wp8) * lane(cin) * f32
    out_row = r8(wo) * lane(cout) * f32
    b = 2 * trs * in_row                      # main input block (double-buffered)
    b += 2 * halo_rows * in_row               # halo block (double-buffered)
    b += tr_in * in_row                       # x scratch
    b += tr * wo8 * lane(cin) * f32           # depthwise accumulator
    b += tr * wo8 * cp * (f32 + wsz)          # lane-padded acc + matmul lhs
    b += tr * wo8 * cop * f32                 # matmul result
    b += tr * out_row                         # epilogue value
    b += 2 * tr * out_row                     # output block (double-buffered)
    b += (kSize * kSize * lane(cin) * f32     # depthwise weights
          + 2 * cp * cop * wsz                # pointwise weights (double-buffered)
          + 2 * r8(3) * lane(cout) * f32)     # BN/PReLU params
    return b


def _pick_tile_rows(ho, budget_bytes, est_fn):
    """Largest output-row tile whose estimated VMEM footprint fits the budget."""
    hi = min(ho, 512)
    if est_fn(hi) <= budget_bytes:
        return hi
    lo = 1
    while lo < hi:
        mid = (lo + hi + 1) // 2
        if est_fn(mid) <= budget_bytes:
            lo = mid
        else:
            hi = mid - 1
    return max(1, lo)


def separable_cbr(x_nchw, w_dw, w_pw, gamma, beta, run_mean, run_var, prelu_alpha,
                  *, kSize, stride=1, eps=1e-3, tile_rows=None, mxu_bf16=False):
    """x_nchw: (N, Cin, H, W); w_dw: (Cin, 1, k, k); w_pw: (Cout, Cin, 1, 1).
    Returns (N, Cout, Ho, Wo) float32 (BatchNorm in inference mode)."""
    n, cin, h, w = x_nchw.shape
    cout = w_pw.shape[0]
    pad = (kSize - 1) // 2
    ho = (h + 2 * pad - kSize) // stride + 1
    wo = (w + 2 * pad - kSize) // stride + 1

    # Compute-only width padding so the (tr, wo8) -> tr*wo8 collapse is a free relayout.
    wo8 = _round_up(wo, 8)
    wp8 = (wo8 - 1) * stride + kSize
    cp = _round_up(cin, 128)                 # matmul K  (padded in VMEM, never in HBM)
    cop = _round_up(cout, 128)               # matmul N  (weights only; output stays Cout)
    halo_rows = max(kSize - stride, 1)

    vmem_cap = _vmem_capacity_bytes()
    budget = int(0.45 * vmem_cap)
    est = functools.partial(_vmem_bytes, kSize=kSize, stride=stride, wo=wo, wo8=wo8,
                            wp8=wp8, cin=cin, cout=cout, cp=cp, cop=cop,
                            halo_rows=halo_rows, mxu_bf16=mxu_bf16)
    if tile_rows is None:
        tr = _pick_tile_rows(ho, budget, est)
    else:
        tr = max(1, min(int(tile_rows), ho))
    n_tiles = pl.cdiv(ho, tr)
    tr = pl.cdiv(ho, n_tiles)                # rebalance: minimize wasted bottom rows
    n_tiles = pl.cdiv(ho, tr)
    if n == 1 and n_tiles == 1 and ho >= 2:  # make sure both TensorCores get work
        n_tiles = 2
        tr = pl.cdiv(ho, n_tiles)
    trs = tr * stride
    tr_in = (tr - 1) * stride + kSize

    # ---- wrapper glue: NCHW->NHWC + zero pad (one fused XLA pass; no halo duplication,
    #      no channel padding in HBM) ----
    x_nhwc = jnp.transpose(x_nchw, (0, 2, 3, 1))
    rows_total = n_tiles * trs + halo_rows
    pad_bottom = rows_total - pad - h
    pad_right = wp8 - pad - w
    x_p = jnp.pad(x_nhwc, ((0, 0), (pad, max(0, pad_bottom)),
                           (pad, max(0, pad_right)), (0, 0)))
    if x_p.shape[1] != rows_total:
        x_p = x_p[:, :rows_total]            # crop never-read bottom rows (stride > 1)
    if x_p.shape[2] != wp8:
        x_p = x_p[:, :, :wp8]                # crop never-read right columns (stride > 1)
    # tiny per-tile halo rows (kSize - stride rows per tile)
    halo_idx = ((jnp.arange(n_tiles) + 1) * trs)[:, None] + jnp.arange(halo_rows)[None, :]
    x_halo = x_p[:, halo_idx]                # (N, nT, halo, Wp8, Cin)  -- small

    # ---- parameter folding (weights are tiny; padding them in HBM is fine) ----
    wdw = jnp.transpose(w_dw[:, 0, :, :], (1, 2, 0)).astype(jnp.float32)   # (k, k, Cin)
    wpw = jnp.transpose(w_pw[:, :, 0, 0], (1, 0))                          # (Cin, Cout)
    wpw = jnp.pad(wpw, ((0, cp - cin), (0, cop - cout)))
    wpw = wpw.astype(jnp.bfloat16 if mxu_bf16 else jnp.float32)            # pre-cast once
    scale = gamma / jnp.sqrt(run_var + eps)
    shift = beta - run_mean * scale
    params = jnp.stack([scale, shift, prelu_alpha]).astype(jnp.float32)    # (3, Cout)

    kernel = functools.partial(_separable_cbr_kernel, kSize=kSize, stride=stride,
                               tr=tr, wo=wo, wo8=wo8, cin=cin, cout=cout,
                               mxu_bf16=mxu_bf16)

    flops = 2 * n * ho * wo * (kSize * kSize * cin + cin * cout)
    bytes_accessed = int(x_p.size * x_p.dtype.itemsize
                         + x_halo.size * x_halo.dtype.itemsize
                         + n * n_tiles * tr * wo * cout * 4
                         + wdw.size * 4 + wpw.size * wpw.dtype.itemsize + params.size * 4)

    out_nhwc = pl.pallas_call(
        kernel,
        out_shape=jax.ShapeDtypeStruct((n, n_tiles * tr, wo, cout), jnp.float32),
        grid_spec=pltpu.PrefetchScalarGridSpec(
            num_scalar_prefetch=0,
            grid=(n, n_tiles),
            in_specs=[
                pl.BlockSpec((None, trs, wp8, cin), lambda b, t: (b, t, 0, 0)),
                pl.BlockSpec((None, None, halo_rows, wp8, cin),
                             lambda b, t: (b, t, 0, 0, 0)),
                pl.BlockSpec((kSize, kSize, cin), lambda b, t: (0, 0, 0)),
                pl.BlockSpec((cp, cop), lambda b, t: (0, 0)),
                pl.BlockSpec((3, cout), lambda b, t: (0, 0)),
            ],
            out_specs=pl.BlockSpec((None, tr, wo, cout), lambda b, t: (b, t, 0, 0)),
            scratch_shapes=[pltpu.VMEM((tr_in, wp8, cin), x_p.dtype)],
        ),
        compiler_params=pltpu.CompilerParams(
            dimension_semantics=("parallel", "parallel"),
            vmem_limit_bytes=int(0.9 * vmem_cap),
        ),
        cost_estimate=pl.CostEstimate(flops=flops, transcendentals=0,
                                      bytes_accessed=bytes_accessed),
    )(x_p, x_halo, wdw, wpw, params)

    if out_nhwc.shape[1] != ho:
        out_nhwc = out_nhwc[:, :ho]
    return jnp.transpose(out_nhwc, (0, 3, 1, 2))                 # back to NCHW


def _reference(x_nchw, w_dw, w_pw, gamma, beta, run_mean, run_var, prelu_alpha,
               *, kSize, stride=1, eps=1e-3):
    """Pure-JAX reference mirroring the PyTorch forward (BN in eval mode)."""
    pad = (kSize - 1) // 2
    cin = x_nchw.shape[1]
    y = jax.lax.conv_general_dilated(
        x_nchw, w_dw, window_strides=(stride, stride),
        padding=((pad, pad), (pad, pad)), feature_group_count=cin,
        dimension_numbers=("NCHW", "OIHW", "NCHW"))
    y = jax.lax.conv_general_dilated(
        y, w_pw, window_strides=(1, 1), padding="VALID",
        dimension_numbers=("NCHW", "OIHW", "NCHW"))
    y = (y - run_mean[None, :, None, None]) / jnp.sqrt(run_var[None, :, None, None] + eps)
    y = y * gamma[None, :, None, None] + beta[None, :, None, None]
    y = jnp.where(y > 0, y, prelu_alpha[None, :, None, None] * y)
    return y


if __name__ == "__main__":
    key = jax.random.PRNGKey(0)

    def make_inputs(k, n, cin, cout, h, w, ksize):
        ks = jax.random.split(k, 8)
        x = jax.random.normal(ks[0], (n, cin, h, w), jnp.float32)
        w_dw = 0.3 * jax.random.normal(ks[1], (cin, 1, ksize, ksize), jnp.float32)
        w_pw = 0.3 * jax.random.normal(ks[2], (cout, cin, 1, 1), jnp.float32)
        gamma = 1.0 + 0.1 * jax.random.normal(ks[3], (cout,), jnp.float32)
        beta = 0.1 * jax.random.normal(ks[4], (cout,), jnp.float32)
        mean = 0.05 * jax.random.normal(ks[5], (cout,), jnp.float32)
        var = 1.0 + 0.1 * jnp.abs(jax.random.normal(ks[6], (cout,), jnp.float32))
        alpha = 0.25 + 0.05 * jax.random.normal(ks[7], (cout,), jnp.float32)
        return x, w_dw, w_pw, gamma, beta, mean, var, alpha

    configs = [
        # (N, Cin, Cout, H,  W,  k, stride, tile_rows, mxu_bf16, tol)
        (2, 4, 8, 16, 16, 3, 1, None, False, 5e-4),   # auto tile, wo % 8 == 0, f32 MXU
        (2, 4, 8, 20, 20, 3, 1, 8,    True,  3e-2),   # multi-tile, wo % 8 != 0, bf16 MXU
        (2, 4, 8, 16, 16, 3, 2, 4,    False, 5e-4),   # stride-2 (strided taps), multi-tile
        (2, 8, 16, 12, 12, 5, 1, 8,   False, 1e-3),   # k=5 (4-row halo), larger channels
    ]

    for i, (n, cin, cout, h, w, k, s, tr, bf16, tol) in enumerate(configs):
        key, sub = jax.random.split(key)
        args = make_inputs(sub, n, cin, cout, h, w, k)
        out = separable_cbr(*args, kSize=k, stride=s, tile_rows=tr, mxu_bf16=bf16)
        out = jax.block_until_ready(out)
        ref = _reference(*args, kSize=k, stride=s)
        assert out.shape == ref.shape, (i, out.shape, ref.shape)
        err = float(jnp.max(jnp.abs(out - ref)))
        assert err < tol, f"config {i}: max abs err {err} >= {tol}"

    print("KERNEL_OK")
</pallas_src>

<mosaic_0001>
module attributes {stable_mosaic.version = 11 : i64} {
  func.func @_separable_cbr_kernel(%arg0: i32, %arg1: i32, %arg2: memref<1x16x18x4xf32, #tpu.memory_space<vmem>>, %arg3: memref<1x1x2x18x4xf32, #tpu.memory_space<vmem>>, %arg4: memref<3x3x4xf32, #tpu.memory_space<vmem>>, %arg5: memref<128x128xf32, #tpu.memory_space<vmem>>, %arg6: memref<3x8xf32, #tpu.memory_space<vmem>>, %arg7: memref<1x16x16x8xf32, #tpu.memory_space<vmem>>, %arg8: memref<18x18x4xf32, #tpu.memory_space<vmem>>) attributes {dimension_semantics = [#tpu.dimension_semantics<parallel>, #tpu.dimension_semantics<parallel>], iteration_bounds = array<i64: 2, 1>, scalar_prefetch = 0 : i64, scratch_operands = 1 : i64, tpu.core_type = #tpu.core_type<tc>, window_params = [{transform_indices = @transform_0, window_bounds = array<i64: 1, 16, 18, 4>}, {transform_indices = @transform_1, window_bounds = array<i64: 1, 1, 2, 18, 4>}, {pipeline_mode = #tpu.pipeline_mode<synchronous>, transform_indices = @transform_2, window_bounds = array<i64: 3, 3, 4>}, {pipeline_mode = #tpu.pipeline_mode<synchronous>, transform_indices = @transform_3, window_bounds = array<i64: 128, 128>}, {pipeline_mode = #tpu.pipeline_mode<synchronous>, transform_indices = @transform_4, window_bounds = array<i64: 3, 8>}, {transform_indices = @transform_5, window_bounds = array<i64: 1, 16, 16, 8>}]} {
    %c0 = arith.constant 0 : index
    %c0_0 = arith.constant 0 : index
    %c0_1 = arith.constant 0 : index
    %c0_2 = arith.constant 0 : index
    %0 = vector.load %arg2[%c0, %c0_0, %c0_1, %c0_2] : memref<1x16x18x4xf32, #tpu.memory_space<vmem>>, vector<1x16x18x4xf32>
    %1 = vector.shape_cast %0 : vector<1x16x18x4xf32> to vector<16x18x4xf32>
    %c0_3 = arith.constant 0 : index
    %c0_4 = arith.constant 0 : index
    %c0_5 = arith.constant 0 : index
    %2 = vector.load %arg8[%c0_3, %c0_4, %c0_5] : memref<18x18x4xf32, #tpu.memory_space<vmem>>, vector<16x18x4xf32>
    tpu.vector_store %arg8[%c0_3, %c0_4, %c0_5], %1 {strides = array<i32>} : memref<18x18x4xf32, #tpu.memory_space<vmem>>, vector<16x18x4xf32>,
    %c0_6 = arith.constant 0 : index
    %c0_7 = arith.constant 0 : index
    %c0_8 = arith.constant 0 : index
    %c0_9 = arith.constant 0 : index
    %c0_10 = arith.constant 0 : index
    %3 = vector.load %arg3[%c0_6, %c0_7, %c0_8, %c0_9, %c0_10] : memref<1x1x2x18x4xf32, #tpu.memory_space<vmem>>, vector<1x1x2x18x4xf32>
    %4 = vector.shape_cast %3 : vector<1x1x2x18x4xf32> to vector<2x18x4xf32>
    %c16 = arith.constant 16 : index
    %c0_11 = arith.constant 0 : index
    %c0_12 = arith.constant 0 : index
    %5 = vector.load %arg8[%c16, %c0_11, %c0_12] : memref<18x18x4xf32, #tpu.memory_space<vmem>>, vector<2x18x4xf32>
    tpu.vector_store %arg8[%c16, %c0_11, %c0_12], %4 {strides = array<i32>} : memref<18x18x4xf32, #tpu.memory_space<vmem>>, vector<2x18x4xf32>,
    %c0_13 = arith.constant 0 : index
    %c0_14 = arith.constant 0 : index
    %c0_15 = arith.constant 0 : index
    %6 = vector.load %arg4[%c0_13, %c0_14, %c0_15] : memref<3x3x4xf32, #tpu.memory_space<vmem>>, vector<3x3x4xf32>
    %cst = arith.constant 0.000000e+00 : f32
    %7 = vector.broadcast %cst : f32 to vector<16x16x4xf32>
    %c0_16 = arith.constant 0 : index
    %c0_17 = arith.constant 0 : index
    %c0_18 = arith.constant 0 : index
    %8 = vector.load %arg8[%c0_16, %c0_17, %c0_18] : memref<18x18x4xf32, #tpu.memory_space<vmem>>, vector<16x16x4xf32>
    %9 = vector.extract_strided_slice %6 {offsets = [0, 0, 0], sizes = [1, 1, 4], strides = [1, 1, 1]} : vector<3x3x4xf32> to vector<1x1x4xf32>
    %10 = vector.shape_cast %9 : vector<1x1x4xf32> to vector<4xf32>
    %11 = vector.shape_cast %10 : vector<4xf32> to vector<1x1x4xf32>
    %12 = vector.broadcast %11 : vector<1x1x4xf32> to vector<16x16x4xf32>
    %13 = arith.mulf %8, %12 : vector<16x16x4xf32>
    %14 = arith.addf %7, %13 : vector<16x16x4xf32>
    %c0_19 = arith.constant 0 : index
    %c1 = arith.constant 1 : index
    %c0_20 = arith.constant 0 : index
    %15 = vector.load %arg8[%c0_19, %c1, %c0_20] : memref<18x18x4xf32, #tpu.memory_space<vmem>>, vector<16x16x4xf32>
    %16 = vector.extract_strided_slice %6 {offsets = [0, 1, 0], sizes = [1, 1, 4], strides = [1, 1, 1]} : vector<3x3x4xf32> to vector<1x1x4xf32>
    %17 = vector.shape_cast %16 : vector<1x1x4xf32> to vector<4xf32>
    %18 = vector.shape_cast %17 : vector<4xf32> to vector<1x1x4xf32>
    %19 = vector.broadcast %18 : vector<1x1x4xf32> to vector<16x16x4xf32>
    %20 = arith.mulf %15, %19 : vector<16x16x4xf32>
    %21 = arith.addf %14, %20 : vector<16x16x4xf32>
    %c0_21 = arith.constant 0 : index
    %c2 = arith.constant 2 : index
    %c0_22 = arith.constant 0 : index
    %22 = vector.load %arg8[%c0_21, %c2, %c0_22] : memref<18x18x4xf32, #tpu.memory_space<vmem>>, vector<16x16x4xf32>
    %23 = vector.extract_strided_slice %6 {offsets = [0, 2, 0], sizes = [1, 1, 4], strides = [1, 1, 1]} : vector<3x3x4xf32> to vector<1x1x4xf32>
    %24 = vector.shape_cast %23 : vector<1x1x4xf32> to vector<4xf32>
    %25 = vector.shape_cast %24 : vector<4xf32> to vector<1x1x4xf32>
    %26 = vector.broadcast %25 : vector<1x1x4xf32> to vector<16x16x4xf32>
    %27 = arith.mulf %22, %26 : vector<16x16x4xf32>
    %28 = arith.addf %21, %27 : vector<16x16x4xf32>
    %c1_23 = arith.constant 1 : index
    %c0_24 = arith.constant 0 : index
    %c0_25 = arith.constant 0 : index
    %29 = vector.load %arg8[%c1_23, %c0_24, %c0_25] : memref<18x18x4xf32, #tpu.memory_space<vmem>>, vector<16x16x4xf32>
    %30 = vector.extract_strided_slice %6 {offsets = [1, 0, 0], sizes = [1, 1, 4], strides = [1, 1, 1]} : vector<3x3x4xf32> to vector<1x1x4xf32>
    %31 = vector.shape_cast %30 : vector<1x1x4xf32> to vector<4xf32>
    %32 = vector.shape_cast %31 : vector<4xf32> to vector<1x1x4xf32>
    %33 = vector.broadcast %32 : vector<1x1x4xf32> to vector<16x16x4xf32>
    %34 = arith.mulf %29, %33 : vector<16x16x4xf32>
    %35 = arith.addf %28, %34 : vector<16x16x4xf32>
    %c1_26 = arith.constant 1 : index
    %c1_27 = arith.constant 1 : index
    %c0_28 = arith.constant 0 : index
    %36 = vector.load %arg8[%c1_26, %c1_27, %c0_28] : memref<18x18x4xf32, #tpu.memory_space<vmem>>, vector<16x16x4xf32>
    %37 = vector.extract_strided_slice %6 {offsets = [1, 1, 0], sizes = [1, 1, 4], strides = [1, 1, 1]} : vector<3x3x4xf32> to vector<1x1x4xf32>
    %38 = vector.shape_cast %37 : vector<1x1x4xf32> to vector<4xf32>
    %39 = vector.shape_cast %38 : vector<4xf32> to vector<1x1x4xf32>
    %40 = vector.broadcast %39 : vector<1x1x4xf32> to vector<16x16x4xf32>
    %41 = arith.mulf %36, %40 : vector<16x16x4xf32>
    %42 = arith.addf %35, %41 : vector<16x16x4xf32>
    %c1_29 = arith.constant 1 : index
    %c2_30 = arith.constant 2 : index
    %c0_31 = arith.constant 0 : index
    %43 = vector.load %arg8[%c1_29, %c2_30, %c0_31] : memref<18x18x4xf32, #tpu.memory_space<vmem>>, vector<16x16x4xf32>
    %44 = vector.extract_strided_slice %6 {offsets = [1, 2, 0], sizes = [1, 1, 4], strides = [1, 1, 1]} : vector<3x3x4xf32> to vector<1x1x4xf32>
    %45 = vector.shape_cast %44 : vector<1x1x4xf32> to vector<4xf32>
    %46 = vector.shape_cast %45 : vector<4xf32> to vector<1x1x4xf32>
    %47 = vector.broadcast %46 : vector<1x1x4xf32> to vector<16x16x4xf32>
    %48 = arith.mulf %43, %47 : vector<16x16x4xf32>
    %49 = arith.addf %42, %48 : vector<16x16x4xf32>
    %c2_32 = arith.constant 2 : index
    %c0_33 = arith.constant 0 : index
    %c0_34 = arith.constant 0 : index
    %50 = vector.load %arg8[%c2_32, %c0_33, %c0_34] : memref<18x18x4xf32, #tpu.memory_space<vmem>>, vector<16x16x4xf32>
    %51 = vector.extract_strided_slice %6 {offsets = [2, 0, 0], sizes = [1, 1, 4], strides = [1, 1, 1]} : vector<3x3x4xf32> to vector<1x1x4xf32>
    %52 = vector.shape_cast %51 : vector<1x1x4xf32> to vector<4xf32>
    %53 = vector.shape_cast %52 : vector<4xf32> to vector<1x1x4xf32>
    %54 = vector.broadcast %53 : vector<1x1x4xf32> to vector<16x16x4xf32>
    %55 = arith.mulf %50, %54 : vector<16x16x4xf32>
    %56 = arith.addf %49, %55 : vector<16x16x4xf32>
    %c2_35 = arith.constant 2 : index
    %c1_36 = arith.constant 1 : index
    %c0_37 = arith.constant 0 : index
    %57 = vector.load %arg8[%c2_35, %c1_36, %c0_37] : memref<18x18x4xf32, #tpu.memory_space<vmem>>, vector<16x16x4xf32>
    %58 = vector.extract_strided_slice %6 {offsets = [2, 1, 0], sizes = [1, 1, 4], strides = [1, 1, 1]} : vector<3x3x4xf32> to vector<1x1x4xf32>
    %59 = vector.shape_cast %58 : vector<1x1x4xf32> to vector<4xf32>
    %60 = vector.shape_cast %59 : vector<4xf32> to vector<1x1x4xf32>
    %61 = vector.broadcast %60 : vector<1x1x4xf32> to vector<16x16x4xf32>
    %62 = arith.mulf %57, %61 : vector<16x16x4xf32>
    %63 = arith.addf %56, %62 : vector<16x16x4xf32>
    %c2_38 = arith.constant 2 : index
    %c2_39 = arith.constant 2 : index
    %c0_40 = arith.constant 0 : index
    %64 = vector.load %arg8[%c2_38, %c2_39, %c0_40] : memref<18x18x4xf32, #tpu.memory_space<vmem>>, vector<16x16x4xf32>
    %65 = vector.extract_strided_slice %6 {offsets = [2, 2, 0], sizes = [1, 1, 4], strides = [1, 1, 1]} : vector<3x3x4xf32> to vector<1x1x4xf32>
    %66 = vector.shape_cast %65 : vector<1x1x4xf32> to vector<4xf32>
    %67 = vector.shape_cast %66 : vector<4xf32> to vector<1x1x4xf32>
    %68 = vector.broadcast %67 : vector<1x1x4xf32> to vector<16x16x4xf32>
    %69 = arith.mulf %64, %68 : vector<16x16x4xf32>
    %70 = arith.addf %63, %69 : vector<16x16x4xf32>
    %cst_41 = arith.constant 0.000000e+00 : f32
    %71 = vector.broadcast %cst_41 : f32 to vector<16x16x124xf32>
    %72 = tpu.concatenate %70, %71 in 2 : vector<16x16x4xf32>, vector<16x16x124xf32> -> vector<16x16x128xf32>
    %73 = vector.shape_cast %72 : vector<16x16x128xf32> to vector<256x128xf32>
    %c0_42 = arith.constant 0 : index
    %c0_43 = arith.constant 0 : index
    %74 = vector.load %arg5[%c0_42, %c0_43] : memref<128x128xf32, #tpu.memory_space<vmem>>, vector<128x128xf32>
    %cst_44 = arith.constant dense<0.000000e+00> : vector<256x128xf32>
    %75 = tpu.matmul %73, %74, %cst_44 {dimension_numbers = #tpu.dot_dimension_numbers<[1], [0], [0], [1], [0, 0, 1, 1], [], []>} : vector<256x128xf32>, vector<128x128xf32>, vector<256x128xf32> -> vector<256x128xf32>
    %76 = vector.shape_cast %75 : vector<256x128xf32> to vector<16x16x128xf32>
    %77 = vector.extract_strided_slice %76 {offsets = [0, 0, 0], sizes = [16, 16, 8], strides = [1, 1, 1]} : vector<16x16x128xf32> to vector<16x16x8xf32>
    %c0_45 = arith.constant 0 : index
    %c0_46 = arith.constant 0 : index
    %78 = vector.load %arg6[%c0_45, %c0_46] : memref<3x8xf32, #tpu.memory_space<vmem>>, vector<3x8xf32>
    %79 = vector.extract_strided_slice %78 {offsets = [0, 0], sizes = [1, 8], strides = [1, 1]} : vector<3x8xf32> to vector<1x8xf32>
    %80 = vector.shape_cast %79 : vector<1x8xf32> to vector<8xf32>
    %81 = vector.shape_cast %80 : vector<8xf32> to vector<1x1x8xf32>
    %82 = vector.broadcast %81 : vector<1x1x8xf32> to vector<16x16x8xf32>
    %83 = arith.mulf %77, %82 : vector<16x16x8xf32>
    %84 = vector.extract_strided_slice %78 {offsets = [1, 0], sizes = [1, 8], strides = [1, 1]} : vector<3x8xf32> to vector<1x8xf32>
    %85 = vector.shape_cast %84 : vector<1x8xf32> to vector<8xf32>
    %86 = vector.shape_cast %85 : vector<8xf32> to vector<1x1x8xf32>
    %87 = vector.broadcast %86 : vector<1x1x8xf32> to vector<16x16x8xf32>
    %88 = arith.addf %83, %87 : vector<16x16x8xf32>
    %cst_47 = arith.constant 0.000000e+00 : f32
    %89 = vector.broadcast %cst_47 : f32 to vector<16x16x8xf32>
    %90 = arith.cmpf ogt, %88, %89 : vector<16x16x8xf32>
    %91 = vector.extract_strided_slice %78 {offsets = [2, 0], sizes = [1, 8], strides = [1, 1]} : vector<3x8xf32> to vector<1x8xf32>
    %92 = vector.shape_cast %91 : vector<1x8xf32> to vector<8xf32>
    %93 = vector.shape_cast %92 : vector<8xf32> to vector<1x1x8xf32>
    %94 = vector.broadcast %93 : vector<1x1x8xf32> to vector<16x16x8xf32>
    %95 = arith.mulf %94, %88 : vector<16x16x8xf32>
    %96 = arith.select %90, %88, %95 : vector<16x16x8xi1>, vector<16x16x8xf32>
    %c0_48 = arith.constant 0 : index
    %c0_49 = arith.constant 0 : index
    %c0_50 = arith.constant 0 : index
    %c0_51 = arith.constant 0 : index
    %97 = vector.load %arg7[%c0_48, %c0_49, %c0_50, %c0_51] : memref<1x16x16x8xf32, #tpu.memory_space<vmem>>, vector<1x16x16x8xf32>
    %98 = vector.shape_cast %97 : vector<1x16x16x8xf32> to vector<16x16x8xf32>
    %99 = vector.shape_cast %96 : vector<16x16x8xf32> to vector<1x16x16x8xf32>
    tpu.vector_store %arg7[%c0_48, %c0_49, %c0_50, %c0_51], %99 {strides = array<i32>} : memref<1x16x16x8xf32, #tpu.memory_space<vmem>>, vector<1x16x16x8xf32>,
    return
  }
  func.func @transform_0(%arg0: i32, %arg1: i32) -> (i32, i32, i32, i32) {
    %c0_i32 = arith.constant 0 : i32
    %c0_i32_0 = arith.constant 0 : i32
    %c0_i32_1 = arith.constant 0 : i32
    return %arg0, %arg1, %c0_i32, %c0_i32_0 : i32, i32, i32, i32
  }
  func.func @transform_1(%arg0: i32, %arg1: i32) -> (i32, i32, i32, i32, i32) {
    %c0_i32 = arith.constant 0 : i32
    %c0_i32_0 = arith.constant 0 : i32
    %c0_i32_1 = arith.constant 0 : i32
    %c0_i32_2 = arith.constant 0 : i32
    return %arg0, %arg1, %c0_i32, %c0_i32_0, %c0_i32_1 : i32, i32, i32, i32, i32
  }
  func.func @transform_2(%arg0: i32, %arg1: i32) -> (i32, i32, i32) {
    %c0_i32 = arith.constant 0 : i32
    %c0_i32_0 = arith.constant 0 : i32
    %c0_i32_1 = arith.constant 0 : i32
    %c0_i32_2 = arith.constant 0 : i32
    return %c0_i32, %c0_i32_0, %c0_i32_1 : i32, i32, i32
  }
  func.func @transform_3(%arg0: i32, %arg1: i32) -> (i32, i32) {
    %c0_i32 = arith.constant 0 : i32
    %c0_i32_0 = arith.constant 0 : i32
    %c0_i32_1 = arith.constant 0 : i32
    return %c0_i32, %c0_i32_0 : i32, i32
  }
  func.func @transform_4(%arg0: i32, %arg1: i32) -> (i32, i32) {
    %c0_i32 = arith.constant 0 : i32
    %c0_i32_0 = arith.constant 0 : i32
    %c0_i32_1 = arith.constant 0 : i32
    return %c0_i32, %c0_i32_0 : i32, i32
  }
  func.func @transform_5(%arg0: i32, %arg1: i32) -> (i32, i32, i32, i32) {
    %c0_i32 = arith.constant 0 : i32
    %c0_i32_0 = arith.constant 0 : i32
    %c0_i32_1 = arith.constant 0 : i32
    return %arg0, %arg1, %c0_i32, %c0_i32_0 : i32, i32, i32, i32
  }
}

</mosaic_0001>

<llo_original>
// kernel: tpu_custom_call.1
$region0: #{tpu_custom_call.1}
  #allocation0 [shape = 'u32[]', space=smem, size = 0x4, offset = 0x4, fixed_abs, tag = 'smem constant byte address 0x4 - core index']
  #allocation1 [shape = 'u32[72,128]{1,0:T(1,128)}', space=vmem, size = 0x9000, scoped, tag = 'internal scratch']
  #allocation2 [shape = 'f32[18,18,4]{2,1,0:T(8,128)}', space=vmem, size = 0x36000, scoped, tag = 'scratch operand']
  %s0 = inlined_call_operand.vmem [shape: f32[2,18,18,4], index: 0, kind: input, shape index: {}]
  %s1 = inlined_call_operand.vmem [shape: f32[2,1,2,18,4], index: 1, kind: input, shape index: {}]
  %s2 = inlined_call_operand.vmem [shape: f32[3,3,4], index: 2, kind: input, shape index: {}]
  %s3 = inlined_call_operand.vmem [shape: f32[128,128], index: 3, kind: input, shape index: {}]
  %s4 = inlined_call_operand.vmem [shape: f32[3,8], index: 4, kind: input, shape index: {}]
  %s5 = inlined_call_operand.vmem [shape: f32[2,16,16,8], index: 5, kind: output, shape index: {}]
  %s6 = sld [smem:[#allocation0]]
  $region53: #{tpu_custom_call.1} parent=0
    _
  %s8 = ssub.s32 1, %s6
  %s9 = scalar_select 0, %s8, %s6
  loop: start=0, step=1, limit=4
  $region2: #{tpu_custom_call.1} parent=0 // loop_pre_header
    _
  $region3: #{tpu_custom_call.1} parent=0 // loop_header
    %s11 = sphi 0, %s15
    %p12 = scmp.ge.s32.totalorder %s11, 4
    %s18 = sphi 0, %s30
    %s19 = sphi 0, %s26
    %s20 = sphi 0, %s18
    %s21 = sphi 0, %s19
    %s22 = sphi 0, %s20
    %s23 = sphi 0, %s21
    %s35 = sphi 0, %s37
    %s38 = sphi 0, %s35
    %s39 = sphi 0, %s38
    %s55 = sphi 0, %s39
    %s63 = sphi 0, %s65
    %s66 = sphi 0, %s63
    %s67 = sphi 0, %s66
    %s83 = sphi 0, %s67
    %s87 = sphi 0, %s87
    %s89 = sphi 0, %s87
    %s90 = sphi 0, %s89
    %s104 = sphi 0, %s90
    %s108 = sphi 0, %s108
    %s110 = sphi 0, %s108
    %s111 = sphi 0, %s110
    %s125 = sphi 0, %s111
    %s129 = sphi 0, %s129
    %s131 = sphi 0, %s129
    %s132 = sphi 0, %s131
    %s146 = sphi 0, %s132
    %s154 = sphi 0, %s156
    %s157 = sphi 0, %s154
    %s158 = sphi 0, %s157
    %s174 = sphi 0, %s158
  $region4: #{tpu_custom_call.1} parent=0 // loop_header_branch
    %14 = sbr.rel (%p12) target = $region8
  $region5: #{tpu_custom_call.1} parent=0 // loop_body
    %s16 = ssub.s32 %s11, 1
    %s17 = ssub.s32 %s11, 2
    %s24 = sadd.s32 1, %s19
    %p25 = scmp.ge.s32.totalorder %s24, 1
    %s26 = scalar_select %p25, 0, %s24
    %s27 = sadd.s32 1, %s18
    %s28 = scalar_select %p25, %s27, %s18
    %p29 = scmp.ge.s32.totalorder %s28, 2
    %s30 = scalar_select %p29, 0, %s28
    %s31 = ssub.s32 %s18, %s30
    %s32 = ssub.s32 %s19, %s26
    %s33 = sor.u32 %s31, %s32
    %p34 = scmp.eq.s32.totalorder %s33, 0
    %s36 = sadd.s32 %s35, 1
    %s37 = scalar_select %p34, %s35, %s36
    %p40 = pneg %p34
    %p41 = scmp.eq.s32.totalorder %s11, 1
    %p42 = por %p40, %p41
    %p43 = scmp.ne.s32.totalorder %s35, %s38
    %p44 = scmp.eq.s32.totalorder %s11, 0
    %p45 = por %p43, %p44
    %p46 = scmp.ne.s32.totalorder %s35, %s38
    %p47 = scmp.eq.s32.totalorder %s16, 1
    %p48 = por %p46, %p47
    %p49 = scmp.ne.s32.totalorder %s38, %s39
    %p50 = scmp.eq.s32.totalorder %s16, 0
    %p51 = por %p49, %p50
    %p52 = scmp.ne.s32.totalorder %s38, %s39
    %p53 = scmp.eq.s32.totalorder %s17, 1
    %p54 = por %p52, %p53
    %p56 = scmp.ne.s32.totalorder %s39, %s55
    %p57 = scmp.eq.s32.totalorder %s17, 0
    %p58 = por %p56, %p57
    %s59 = ssub.s32 %s18, %s30
    %s60 = ssub.s32 %s19, %s26
    %s61 = sor.u32 %s59, %s60
    %p62 = scmp.eq.s32.totalorder %s61, 0
    %s64 = sadd.s32 %s63, 1
    %s65 = scalar_select %p62, %s63, %s64
    %p68 = pneg %p62
    %p69 = scmp.eq.s32.totalorder %s11, 1
    %p70 = por %p68, %p69
    %p71 = scmp.ne.s32.totalorder %s63, %s66
    %p72 = scmp.eq.s32.totalorder %s11, 0
    %p73 = por %p71, %p72
    %p74 = scmp.ne.s32.totalorder %s63, %s66
    %p75 = scmp.eq.s32.totalorder %s16, 1
    %p76 = por %p74, %p75
    %p77 = scmp.ne.s32.totalorder %s66, %s67
    %p78 = scmp.eq.s32.totalorder %s16, 0
    %p79 = por %p77, %p78
    %p80 = scmp.ne.s32.totalorder %s66, %s67
    %p81 = scmp.eq.s32.totalorder %s17, 1
    %p82 = por %p80, %p81
    %p84 = scmp.ne.s32.totalorder %s67, %s83
    %p85 = scmp.eq.s32.totalorder %s17, 0
    %p86 = por %p84, %p85
    %s88 = sadd.s32 %s87, 1
    %p91 = scmp.eq.s32.totalorder %s11, 1
    %p92 = scmp.ne.s32.totalorder %s87, %s89
    %p93 = scmp.eq.s32.totalorder %s11, 0
    %p94 = por %p92, %p93
    %p95 = scmp.ne.s32.totalorder %s87, %s89
    %p96 = scmp.eq.s32.totalorder %s16, 1
    %p97 = por %p95, %p96
    %p98 = scmp.ne.s32.totalorder %s89, %s90
    %p99 = scmp.eq.s32.totalorder %s16, 0
    %p100 = por %p98, %p99
    %p101 = scmp.ne.s32.totalorder %s89, %s90
    %p102 = scmp.eq.s32.totalorder %s17, 1
    %p103 = por %p101, %p102
    %p105 = scmp.ne.s32.totalorder %s90, %s104
    %p106 = scmp.eq.s32.totalorder %s17, 0
    %p107 = por %p105, %p106
    %s109 = sadd.s32 %s108, 1
    %p112 = scmp.eq.s32.totalorder %s11, 1
    %p113 = scmp.ne.s32.totalorder %s108, %s110
    %p114 = scmp.eq.s32.totalorder %s11, 0
    %p115 = por %p113, %p114
    %p116 = scmp.ne.s32.totalorder %s108, %s110
    %p117 = scmp.eq.s32.totalorder %s16, 1
    %p118 = por %p116, %p117
    %p119 = scmp.ne.s32.totalorder %s110, %s111
    %p120 = scmp.eq.s32.totalorder %s16, 0
    %p121 = por %p119, %p120
    %p122 = scmp.ne.s32.totalorder %s110, %s111
    %p123 = scmp.eq.s32.totalorder %s17, 1
    %p124 = por %p122, %p123
    %p126 = scmp.ne.s32.totalorder %s111, %s125
    %p127 = scmp.eq.s32.totalorder %s17, 0
    %p128 = por %p126, %p127
    %s130 = sadd.s32 %s129, 1
    %p133 = scmp.eq.s32.totalorder %s11, 1
    %p134 = scmp.ne.s32.totalorder %s129, %s131
    %p135 = scmp.eq.s32.totalorder %s11, 0
    %p136 = por %p134, %p135
    %p137 = scmp.ne.s32.totalorder %s129, %s131
    %p138 = scmp.eq.s32.totalorder %s16, 1
    %p139 = por %p137, %p138
    %p140 = scmp.ne.s32.totalorder %s131, %s132
    %p141 = scmp.eq.s32.totalorder %s16, 0
    %p142 = por %p140, %p141
    %p143 = scmp.ne.s32.totalorder %s131, %s132
    %p144 = scmp.eq.s32.totalorder %s17, 1
    %p145 = por %p143, %p144
    %p147 = scmp.ne.s32.totalorder %s132, %s146
    %p148 = scmp.eq.s32.totalorder %s17, 0
    %p149 = por %p147, %p148
    %s150 = ssub.s32 %s18, %s30
    %s151 = ssub.s32 %s19, %s26
    %s152 = sor.u32 %s150, %s151
    %p153 = scmp.eq.s32.totalorder %s152, 0
    %s155 = sadd.s32 %s154, 1
    %s156 = scalar_select %p153, %s154, %s155
    %p159 = pneg %p153
    %p160 = scmp.eq.s32.totalorder %s11, 1
    %p161 = por %p159, %p160
    %p162 = scmp.ne.s32.totalorder %s154, %s157
    %p163 = scmp.eq.s32.totalorder %s11, 0
    %p164 = por %p162, %p163
    %p165 = scmp.ne.s32.totalorder %s154, %s157
    %p166 = scmp.eq.s32.totalorder %s16, 1
    %p167 = por %p165, %p166
    %p168 = scmp.ne.s32.totalorder %s157, %s158
    %p169 = scmp.eq.s32.totalorder %s16, 0
    %p170 = por %p168, %p169
    %p171 = scmp.ne.s32.totalorder %s157, %s158
    %p172 = scmp.eq.s32.totalorder %s17, 1
    %p173 = por %p171, %p172
    %p175 = scmp.ne.s32.totalorder %s158, %s174
    %p176 = scmp.eq.s32.totalorder %s17, 0
    %p177 = por %p175, %p176
    %p178 = scmp.le.s32.totalorder 1, %s11
    %p179 = scmp.lt.s32.totalorder %s11, 3
    %p180 = pnand %p178, %p179
    %p181 = pneg %p180
    // Predicated region
    $region9: #{tpu_custom_call.1} parent=5 // pred_check
      _
    $region10: #{tpu_custom_call.1} parent=5 // pred_check_branch
      %183 = sbr.rel (%p180) target = $region12
    $region11: #{tpu_custom_call.1} parent=5 // pred_region
      %s184 = ssub.s32 %s11, 1
      // Predicated region
      $region13: #{tpu_custom_call.1} parent=11 // pred_check
        %p185 = pneg %p100
      $region14: #{tpu_custom_call.1} parent=11 // pred_check_branch
        %187 = sbr.rel (%p185) target = $region16
      $region15: #{tpu_custom_call.1} parent=11 // pred_region
        _
      $region16: #{tpu_custom_call.1} parent=11 // pred_fallthru
        _
      // Predicated region
      $region17: #{tpu_custom_call.1} parent=11 // pred_check
        %p188 = pneg %p121
      $region18: #{tpu_custom_call.1} parent=11 // pred_check_branch
        %190 = sbr.rel (%p188) target = $region20
      $region19: #{tpu_custom_call.1} parent=11 // pred_region
        _
      $region20: #{tpu_custom_call.1} parent=11 // pred_fallthru
        _
      // Predicated region
      $region21: #{tpu_custom_call.1} parent=11 // pred_check
        %p191 = pneg %p142
      $region22: #{tpu_custom_call.1} parent=11 // pred_check_branch
        %193 = sbr.rel (%p191) target = $region24
      $region23: #{tpu_custom_call.1} parent=11 // pred_region
        _
      $region24: #{tpu_custom_call.1} parent=11 // pred_fallthru
        _
    $region12: #{tpu_custom_call.1} parent=5 // pred_fallthru
      _
    %p194 = scmp.lt.s32.totalorder %s11, 2
    // Predicated region
    $region25: #{tpu_custom_call.1} parent=5 // pred_check
      %p195 = pneg %p194
    $region26: #{tpu_custom_call.1} parent=5 // pred_check_branch
      %197 = sbr.rel (%p195) target = $region28
    $region27: #{tpu_custom_call.1} parent=5 // pred_region
      // Predicated region
      $region29: #{tpu_custom_call.1} parent=27 // pred_check
        %p198 = pneg %p45
      $region30: #{tpu_custom_call.1} parent=27 // pred_check_branch
        %200 = sbr.rel (%p198) target = $region32
      $region31: #{tpu_custom_call.1} parent=27 // pred_region
        %s201 = smul.u32 16, %s19
        %s202 = ssub.s32 18, %s201
        %p203 = scmp.lt.s32.totalorder %s202, 16
        %s204 = scalar_select %p203, %s202, 16
        %s205 = smul.u32 8, %s204
        %s206 = smul.u32 %s205, 3
        %p207 = scmp.lt.s32.totalorder %s18, 1
        %s208 = scalar_select %p207, %s18, 1
        %p209 = scmp.lt.s32.totalorder %s201, 17
        %s210 = scalar_select %p209, %s201, 17
        %s211 = smul.addr %s210, 3
        %s212 = smul.addr %s208, 54
        %s213 = sadd.s32 %s211, %s212
        %s214 = smul.addr %s213, 8
        %s215 = scalar_lea.vmem %s0, %s214
        %s216 = smul.u32 16, %s19
        %s217 = ssub.s32 18, %s216
        %p218 = scmp.lt.s32.totalorder %s217, 16
        %s219 = scalar_select %p218, %s217, 16
        %s220 = smul.u32 8, %s219
        %s221 = smul.u32 %s220, 3
      $region32: #{tpu_custom_call.1} parent=27 // pred_fallthru
        _
      // Predicated region
      $region33: #{tpu_custom_call.1} parent=27 // pred_check
        %p222 = pneg %p73
      $region34: #{tpu_custom_call.1} parent=27 // pred_check_branch
        %224 = sbr.rel (%p222) target = $region36
      $region35: #{tpu_custom_call.1} parent=27 // pred_region
        %p225 = scmp.lt.s32.totalorder %s18, 1
        %s226 = scalar_select %p225, %s18, 1
        %p227 = scmp.lt.s32.totalorder %s19, 0
        %s228 = scalar_select %p227, %s19, 0
        %s229 = smul.addr %s228, 6
        %s230 = smul.addr %s226, 6
        %s231 = sadd.s32 %s229, %s230
        %s232 = smul.addr %s231, 8
        %s233 = scalar_lea.vmem %s1, %s232
      $region36: #{tpu_custom_call.1} parent=27 // pred_fallthru
        _
    $region28: #{tpu_custom_call.1} parent=5 // pred_fallthru
      _
    %p234 = scmp.le.s32.totalorder 1, %s11
    %p235 = scmp.lt.s32.totalorder %s11, 3
    %p236 = pnand %p234, %p235
    %p237 = pneg %p236
    // Predicated region
    $region37: #{tpu_custom_call.1} parent=5 // pred_check
      _
    $region38: #{tpu_custom_call.1} parent=5 // pred_check_branch
      %239 = sbr.rel (%p236) target = $region40
    $region39: #{tpu_custom_call.1} parent=5 // pred_region
      %s240 = ssub.s32 %s11, 1
      %s241 = smul.u32 16, %s21
      %s242 = ssub.s32 18, %s241
      %p243 = scmp.lt.s32.totalorder %s242, 16
      %s244 = scalar_select %p243, %s242, 16
      %s245 = smul.u32 8, %s244
      %s246 = smul.u32 %s245, 3
      %p247 = scmp.lt.s32.totalorder %s20, 1
      %s248 = scalar_select %p247, %s20, 1
      %p249 = scmp.lt.s32.totalorder %s241, 17
      %s250 = scalar_select %p249, %s241, 17
      %s251 = smul.addr %s250, 3
      %s252 = smul.addr %s248, 54
      %s253 = sadd.s32 %s251, %s252
      %s254 = smul.addr %s253, 8
      %s255 = scalar_lea.vmem %s0, %s254
      %p256 = pneg %p51
      %p257 = pneg %p48
      %p258 = scmp.lt.s32.totalorder %s20, 1
      %s259 = scalar_select %p258, %s20, 1
      %p260 = scmp.lt.s32.totalorder %s21, 0
      %s261 = scalar_select %p260, %s21, 0
      %s262 = smul.addr %s261, 6
      %s263 = smul.addr %s259, 6
      %s264 = sadd.s32 %s262, %s263
      %s265 = smul.addr %s264, 8
      %s266 = scalar_lea.vmem %s1, %s265
      %p267 = pneg %p79
      %p268 = pneg %p76
      %p269 = pneg %p100
      %p270 = pneg %p97
      %p271 = pneg %p121
      %p272 = pneg %p118
      %p273 = pneg %p142
      %p274 = pneg %p139
      %p275 = pneg %p170
      %p276 = pneg %p167
      %s277 = smul.u32 16, %s21
      %p278 = scmp.lt.s32.totalorder %s20, 1
      %s279 = scalar_select %p278, %s20, 1
      %p280 = scmp.lt.s32.totalorder %s277, 15
      %s281 = scalar_select %p280, %s277, 15
      %s282 = smul.addr %s281, 2
      %s283 = smul.addr %s279, 32
      %s284 = sadd.s32 %s282, %s283
      %s285 = smul.addr %s284, 8
      %s286 = scalar_lea.vmem %s5, %s285
      %s287 = smul.u32 16, %s21
      %s288 = ssub.s32 18, %s287
      %p289 = scmp.lt.s32.totalorder %s288, 16
      %s290 = scalar_select %p289, %s288, 16
      %s291 = smul.u32 8, %s290
      %s292 = smul.u32 %s291, 3
      %p293 = scmp.lt.s32.totalorder %s20, 1
      %s294 = scalar_select %p293, %s20, 1
      %p295 = scmp.lt.s32.totalorder %s287, 17
      %s296 = scalar_select %p295, %s287, 17
      %s297 = smul.addr %s296, 3
      %s298 = smul.addr %s294, 54
      %s299 = sadd.s32 %s297, %s298
      %s300 = smul.addr %s299, 8
      %s301 = scalar_lea.vmem %s0, %s300
      %s302 = smul.u32 16, %s21
      %s303 = ssub.s32 18, %s302
      %p304 = scmp.lt.s32.totalorder %s303, 16
      %s305 = scalar_select %p304, %s303, 16
      %s306 = smul.u32 8, %s305
      %s307 = smul.u32 %s306, 3
      %p308 = scmp.lt.s32.totalorder %s20, 1
      %s309 = scalar_select %p308, %s20, 1
      %p310 = scmp.lt.s32.totalorder %s21, 0
      %s311 = scalar_select %p310, %s21, 0
      %s312 = smul.addr %s311, 6
      %s313 = smul.addr %s309, 6
      %s314 = sadd.s32 %s312, %s313
      %s315 = smul.addr %s314, 8
      %s316 = scalar_lea.vmem %s1, %s315
      %s317 = smul.u32 16, %s21
      %p318 = scmp.lt.s32.totalorder %s20, 1
      %s319 = scalar_select %p318, %s20, 1
      %p320 = scmp.lt.s32.totalorder %s317, 15
      %s321 = scalar_select %p320, %s317, 15
      %s322 = smul.addr %s321, 2
      %s323 = smul.addr %s319, 32
      %s324 = sadd.s32 %s322, %s323
      %s325 = smul.addr %s324, 8
      %s326 = scalar_lea.vmem %s5, %s325
      %s327 = smul.u32 16, %s21
      %v328 = vld [vmem:[%s301] sm:$0xff]
      %v329 = vld [vmem:[%s301 + $0x8] sm:$0xff]
      %v330 = vld [vmem:[%s301 + $0x10] sm:$0x3]
      %v331 = vld [vmem:[%s301 + $0x18] sm:$0xff]
      %v332 = vld [vmem:[%s301 + $0x20] sm:$0xff]
      %v333 = vld [vmem:[%s301 + $0x28] sm:$0x3]
      %v334 = vld [vmem:[%s301 + $0x30] sm:$0xff]
      %v335 = vld [vmem:[%s301 + $0x38] sm:$0xff]
      %v336 = vld [vmem:[%s301 + $0x40] sm:$0x3]
      %v337 = vld [vmem:[%s301 + $0x48] sm:$0xff]
      %v338 = vld [vmem:[%s301 + $0x50] sm:$0xff]
      %v339 = vld [vmem:[%s301 + $0x58] sm:$0x3]
      %v340 = vld [vmem:[%s301 + $0x60] sm:$0xff]
      %v341 = vld [vmem:[%s301 + $0x68] sm:$0xff]
      %v342 = vld [vmem:[%s301 + $0x70] sm:$0x3]
      %v343 = vld [vmem:[%s301 + $0x78] sm:$0xff]
      %v344 = vld [vmem:[%s301 + $0x80] sm:$0xff]
      %v345 = vld [vmem:[%s301 + $0x88] sm:$0x3]
      %v346 = vld [vmem:[%s301 + $0x90] sm:$0xff]
      %v347 = vld [vmem:[%s301 + $0x98] sm:$0xff]
      %v348 = vld [vmem:[%s301 + $0xa0] sm:$0x3]
      %v349 = vld [vmem:[%s301 + $0xa8] sm:$0xff]
      %v350 = vld [vmem:[%s301 + $0xb0] sm:$0xff]
      %v351 = vld [vmem:[%s301 + $0xb8] sm:$0x3]
      %v352 = vld [vmem:[%s301 + $0xc0] sm:$0xff]
      %v353 = vld [vmem:[%s301 + $0xc8] sm:$0xff]
      %v354 = vld [vmem:[%s301 + $0xd0] sm:$0x3]
      %v355 = vld [vmem:[%s301 + $0xd8] sm:$0xff]
      %v356 = vld [vmem:[%s301 + $0xe0] sm:$0xff]
      %v357 = vld [vmem:[%s301 + $0xe8] sm:$0x3]
      %v358 = vld [vmem:[%s301 + $0xf0] sm:$0xff]
      %v359 = vld [vmem:[%s301 + $0xf8] sm:$0xff]
      %v360 = vld [vmem:[%s301 + $0x100] sm:$0x3]
      %v361 = vld [vmem:[%s301 + $0x108] sm:$0xff]
      %v362 = vld [vmem:[%s301 + $0x110] sm:$0xff]
      %v363 = vld [vmem:[%s301 + $0x118] sm:$0x3]
      %v364 = vld [vmem:[%s301 + $0x120] sm:$0xff]
      %v365 = vld [vmem:[%s301 + $0x128] sm:$0xff]
      %v366 = vld [vmem:[%s301 + $0x130] sm:$0x3]
      %v367 = vld [vmem:[%s301 + $0x138] sm:$0xff]
      %v368 = vld [vmem:[%s301 + $0x140] sm:$0xff]
      %v369 = vld [vmem:[%s301 + $0x148] sm:$0x3]
      %v370 = vld [vmem:[%s301 + $0x150] sm:$0xff]
      %v371 = vld [vmem:[%s301 + $0x158] sm:$0xff]
      %v372 = vld [vmem:[%s301 + $0x160] sm:$0x3]
      %v373 = vld [vmem:[%s301 + $0x168] sm:$0xff]
      %v374 = vld [vmem:[%s301 + $0x170] sm:$0xff]
      %v375 = vld [vmem:[%s301 + $0x178] sm:$0x3]
      %vm376 = vcmask 31744
      %377 = vst.msk [vmem:[#allocation2] sm:$0xff] %vm376, %v328
      %378 = vst.msk [vmem:[#allocation2 + $0x8] sm:$0xff] %vm376, %v329
      %vm379 = vcmask 25600
      %380 = vst.msk [vmem:[#allocation2 + $0x10] sm:$0x3] %vm379, %v330
      %381 = vst.msk [vmem:[#allocation2 + $0x18] sm:$0xff] %vm376, %v331
      %382 = vst.msk [vmem:[#allocation2 + $0x20] sm:$0xff] %vm376, %v332
      %383 = vst.msk [vmem:[#allocation2 + $0x28] sm:$0x3] %vm379, %v333
      %384 = vst.msk [vmem:[#allocation2 + $0x30] sm:$0xff] %vm376, %v334
      %385 = vst.msk [vmem:[#allocation2 + $0x38] sm:$0xff] %vm376, %v335
      %386 = vst.msk [vmem:[#allocation2 + $0x40] sm:$0x3] %vm379, %v336
      %387 = vst.msk [vmem:[#allocation2 + $0x48] sm:$0xff] %vm376, %v337
      %388 = vst.msk [vmem:[#allocation2 + $0x50] sm:$0xff] %vm376, %v338
      %389 = vst.msk [vmem:[#allocation2 + $0x58] sm:$0x3] %vm379, %v339
      %390 = vst.msk [vmem:[#allocation2 + $0x60] sm:$0xff] %vm376, %v340
      %391 = vst.msk [vmem:[#allocation2 + $0x68] sm:$0xff] %vm376, %v341
      %392 = vst.msk [vmem:[#allocation2 + $0x70] sm:$0x3] %vm379, %v342
      %393 = vst.msk [vmem:[#allocation2 + $0x78] sm:$0xff] %vm376, %v343
      %394 = vst.msk [vmem:[#allocation2 + $0x80] sm:$0xff] %vm376, %v344
      %395 = vst.msk [vmem:[#allocation2 + $0x88] sm:$0x3] %vm379, %v345
      %396 = vst.msk [vmem:[#allocation2 + $0x90] sm:$0xff] %vm376, %v346
      %397 = vst.msk [vmem:[#allocation2 + $0x98] sm:$0xff] %vm376, %v347
      %398 = vst.msk [vmem:[#allocation2 + $0xa0] sm:$0x3] %vm379, %v348
      %399 = vst.msk [vmem:[#allocation2 + $0xa8] sm:$0xff] %vm376, %v349
      %400 = vst.msk [vmem:[#allocation2 + $0xb0] sm:$0xff] %vm376, %v350
      %401 = vst.msk [vmem:[#allocation2 + $0xb8] sm:$0x3] %vm379, %v351
      %402 = vst.msk [vmem:[#allocation2 + $0xc0] sm:$0xff] %vm376, %v352
      %403 = vst.msk [vmem:[#allocation2 + $0xc8] sm:$0xff] %vm376, %v353
      %404 = vst.msk [vmem:[#allocation2 + $0xd0] sm:$0x3] %vm379, %v354
      %405 = vst.msk [vmem:[#allocation2 + $0xd8] sm:$0xff] %vm376, %v355
      %406 = vst.msk [vmem:[#allocation2 + $0xe0] sm:$0xff] %vm376, %v356
      %407 = vst.msk [vmem:[#allocation2 + $0xe8] sm:$0x3] %vm379, %v357
      %408 = vst.msk [vmem:[#allocation2 + $0xf0] sm:$0xff] %vm376, %v358
      %409 = vst.msk [vmem:[#allocation2 + $0xf8] sm:$0xff] %vm376, %v359
      %410 = vst.msk [vmem:[#allocation2 + $0x100] sm:$0x3] %vm379, %v360
      %411 = vst.msk [vmem:[#allocation2 + $0x108] sm:$0xff] %vm376, %v361
      %412 = vst.msk [vmem:[#allocation2 + $0x110] sm:$0xff] %vm376, %v362
      %413 = vst.msk [vmem:[#allocation2 + $0x118] sm:$0x3] %vm379, %v363
      %414 = vst.msk [vmem:[#allocation2 + $0x120] sm:$0xff] %vm376, %v364
      %415 = vst.msk [vmem:[#allocation2 + $0x128] sm:$0xff] %vm376, %v365
      %416 = vst.msk [vmem:[#allocation2 + $0x130] sm:$0x3] %vm379, %v366
      %417 = vst.msk [vmem:[#allocation2 + $0x138] sm:$0xff] %vm376, %v367
      %418 = vst.msk [vmem:[#allocation2 + $0x140] sm:$0xff] %vm376, %v368
      %419 = vst.msk [vmem:[#allocation2 + $0x148] sm:$0x3] %vm379, %v369
      %420 = vst.msk [vmem:[#allocation2 + $0x150] sm:$0xff] %vm376, %v370
      %421 = vst.msk [vmem:[#allocation2 + $0x158] sm:$0xff] %vm376, %v371
      %422 = vst.msk [vmem:[#allocation2 + $0x160] sm:$0x3] %vm379, %v372
      %423 = vst.msk [vmem:[#allocation2 + $0x168] sm:$0xff] %vm376, %v373
      %424 = vst.msk [vmem:[#allocation2 + $0x170] sm:$0xff] %vm376, %v374
      %425 = vst.msk [vmem:[#allocation2 + $0x178] sm:$0x3] %vm379, %v375
      %v426 = vld [vmem:[%s316] sm:$0xff]
      %v427 = vld [vmem:[%s316 + $0x8] sm:$0xff]
      %v428 = vld [vmem:[%s316 + $0x10] sm:$0x3]
      %v429 = vld [vmem:[%s316 + $0x18] sm:$0xff]
      %v430 = vld [vmem:[%s316 + $0x20] sm:$0xff]
      %v431 = vld [vmem:[%s316 + $0x28] sm:$0x3]
      %s432 = scalar_lea.vmem [#allocation2], 384
      %433 = vst.msk [vmem:[%s432] sm:$0xff] %vm376, %v426
      %434 = vst.msk [vmem:[%s432 + $0x8] sm:$0xff] %vm376, %v427
      %435 = vst.msk [vmem:[%s432 + $0x10] sm:$0x3] %vm379, %v428
      %436 = vst.msk [vmem:[%s432 + $0x18] sm:$0xff] %vm376, %v429
      %437 = vst.msk [vmem:[%s432 + $0x20] sm:$0xff] %vm376, %v430
      %438 = vst.msk [vmem:[%s432 + $0x28] sm:$0x3] %vm379, %v431
      %v439 = vld [vmem:[%s2] sm:$0x7]
      %v440 = vld [vmem:[%s2 + $0x4] sm:$0x7]
      %v441 = vld [vmem:[%s2 + $0x8] sm:$0x7]
      %v442 = vld [vmem:[#allocation2] sm:$0xff]
      %v443 = vld [vmem:[#allocation2 + $0x8] sm:$0xff]
      %v444 = vld [vmem:[#allocation2 + $0x18] sm:$0xff]
      %v445 = vld [vmem:[#allocation2 + $0x20] sm:$0xff]
      %v446 = vld [vmem:[#allocation2 + $0x30] sm:$0xff]
      %v447 = vld [vmem:[#allocation2 + $0x38] sm:$0xff]
      %v448 = vld [vmem:[#allocation2 + $0x48] sm:$0xff]
      %v449 = vld [vmem:[#allocation2 + $0x50] sm:$0xff]
      %v450 = vld [vmem:[#allocation2 + $0x60] sm:$0xff]
      %v451 = vld [vmem:[#allocation2 + $0x68] sm:$0xff]
      %v452 = vld [vmem:[#allocation2 + $0x78] sm:$0xff]
      %v453 = vld [vmem:[#allocation2 + $0x80] sm:$0xff]
      %v454 = vld [vmem:[#allocation2 + $0x90] sm:$0xff]
      %v455 = vld [vmem:[#allocation2 + $0x98] sm:$0xff]
      %v456 = vld [vmem:[#allocation2 + $0xa8] sm:$0xff]
      %v457 = vld [vmem:[#allocation2 + $0xb0] sm:$0xff]
      %v458 = vld [vmem:[#allocation2 + $0xc0] sm:$0xff]
      %v459 = vld [vmem:[#allocation2 + $0xc8] sm:$0xff]
      %v460 = vld [vmem:[#allocation2 + $0xd8] sm:$0xff]
      %v461 = vld [vmem:[#allocation2 + $0xe0] sm:$0xff]
      %v462 = vld [vmem:[#allocation2 + $0xf0] sm:$0xff]
      %v463 = vld [vmem:[#allocation2 + $0xf8] sm:$0xff]
      %v464 = vld [vmem:[#allocation2 + $0x108] sm:$0xff]
      %v465 = vld [vmem:[#allocation2 + $0x110] sm:$0xff]
      %v466 = vld [vmem:[#allocation2 + $0x120] sm:$0xff]
      %v467 = vld [vmem:[#allocation2 + $0x128] sm:$0xff]
      %v468 = vld [vmem:[#allocation2 + $0x138] sm:$0xff]
      %v469 = vld [vmem:[#allocation2 + $0x140] sm:$0xff]
      %v470 = vld [vmem:[#allocation2 + $0x150] sm:$0xff]
      %v471 = vld [vmem:[#allocation2 + $0x158] sm:$0xff]
      %v472 = vld [vmem:[#allocation2 + $0x168] sm:$0xff]
      %v473 = vld [vmem:[#allocation2 + $0x170] sm:$0xff]
      %v474 = vperm.slane %v439, 0
      %v475 = vmul.f32 %v442, %v474
      %v476 = vmul.f32 %v443, %v474
      %v477 = vmul.f32 %v444, %v474
      %v478 = vmul.f32 %v445, %v474
      %v479 = vmul.f32 %v446, %v474
      %v480 = vmul.f32 %v447, %v474
      %v481 = vmul.f32 %v448, %v474
      %v482 = vmul.f32 %v449, %v474
      %v483 = vmul.f32 %v450, %v474
      %v484 = vmul.f32 %v451, %v474
      %v485 = vmul.f32 %v452, %v474
      %v486 = vmul.f32 %v453, %v474
      %v487 = vmul.f32 %v454, %v474
      %v488 = vmul.f32 %v455, %v474
      %v489 = vmul.f32 %v456, %v474
      %v490 = vmul.f32 %v457, %v474
      %v491 = vmul.f32 %v458, %v474
      %v492 = vmul.f32 %v459, %v474
      %v493 = vmul.f32 %v460, %v474
      %v494 = vmul.f32 %v461, %v474
      %v495 = vmul.f32 %v462, %v474
      %v496 = vmul.f32 %v463, %v474
      %v497 = vmul.f32 %v464, %v474
      %v498 = vmul.f32 %v465, %v474
      %v499 = vmul.f32 %v466, %v474
      %v500 = vmul.f32 %v467, %v474
      %v501 = vmul.f32 %v468, %v474
      %v502 = vmul.f32 %v469, %v474
      %v503 = vmul.f32 %v470, %v474
      %v504 = vmul.f32 %v471, %v474
      %v505 = vmul.f32 %v472, %v474
      %v506 = vmul.f32 %v473, %v474
      %v507 = vadd.f32 %v475, 0.0
      %v508 = vadd.f32 %v476, 0.0
      %v509 = vadd.f32 %v477, 0.0
      %v510 = vadd.f32 %v478, 0.0
      %v511 = vadd.f32 %v479, 0.0
      %v512 = vadd.f32 %v480, 0.0
      %v513 = vadd.f32 %v481, 0.0
      %v514 = vadd.f32 %v482, 0.0
      %v515 = vadd.f32 %v483, 0.0
      %v516 = vadd.f32 %v484, 0.0
      %v517 = vadd.f32 %v485, 0.0
      %v518 = vadd.f32 %v486, 0.0
      %v519 = vadd.f32 %v487, 0.0
      %v520 = vadd.f32 %v488, 0.0
      %v521 = vadd.f32 %v489, 0.0
      %v522 = vadd.f32 %v490, 0.0
      %v523 = vadd.f32 %v491, 0.0
      %v524 = vadd.f32 %v492, 0.0
      %v525 = vadd.f32 %v493, 0.0
      %v526 = vadd.f32 %v494, 0.0
      %v527 = vadd.f32 %v495, 0.0
      %v528 = vadd.f32 %v496, 0.0
      %v529 = vadd.f32 %v497, 0.0
      %v530 = vadd.f32 %v498, 0.0
      %v531 = vadd.f32 %v499, 0.0
      %v532 = vadd.f32 %v500, 0.0
      %v533 = vadd.f32 %v501, 0.0
      %v534 = vadd.f32 %v502, 0.0
      %v535 = vadd.f32 %v503, 0.0
      %v536 = vadd.f32 %v504, 0.0
      %v537 = vadd.f32 %v505, 0.0
      %v538 = vadd.f32 %v506, 0.0
      %v539 = vld [vmem:[#allocation2 + $0x1] sm:$0xff]
      %v540 = vld [vmem:[#allocation2 + $0x9] sm:$0xff]
      %v541 = vld [vmem:[#allocation2 + $0x19] sm:$0xff]
      %v542 = vld [vmem:[#allocation2 + $0x21] sm:$0xff]
      %v543 = vld [vmem:[#allocation2 + $0x31] sm:$0xff]
      %v544 = vld [vmem:[#allocation2 + $0x39] sm:$0xff]
      %v545 = vld [vmem:[#allocation2 + $0x49] sm:$0xff]
      %v546 = vld [vmem:[#allocation2 + $0x51] sm:$0xff]
      %v547 = vld [vmem:[#allocation2 + $0x61] sm:$0xff]
      %v548 = vld [vmem:[#allocation2 + $0x69] sm:$0xff]
      %v549 = vld [vmem:[#allocation2 + $0x79] sm:$0xff]
      %v550 = vld [vmem:[#allocation2 + $0x81] sm:$0xff]
      %v551 = vld [vmem:[#allocation2 + $0x91] sm:$0xff]
      %v552 = vld [vmem:[#allocation2 + $0x99] sm:$0xff]
      %v553 = vld [vmem:[#allocation2 + $0xa9] sm:$0xff]
      %v554 = vld [vmem:[#allocation2 + $0xb1] sm:$0xff]
      %v555 = vld [vmem:[#allocation2 + $0xc1] sm:$0xff]
      %v556 = vld [vmem:[#allocation2 + $0xc9] sm:$0xff]
      %v557 = vld [vmem:[#allocation2 + $0xd9] sm:$0xff]
      %v558 = vld [vmem:[#allocation2 + $0xe1] sm:$0xff]
      %v559 = vld [vmem:[#allocation2 + $0xf1] sm:$0xff]
      %v560 = vld [vmem:[#allocation2 + $0xf9] sm:$0xff]
      %v561 = vld [vmem:[#allocation2 + $0x109] sm:$0xff]
      %v562 = vld [vmem:[#allocation2 + $0x111] sm:$0xff]
      %v563 = vld [vmem:[#allocation2 + $0x121] sm:$0xff]
      %v564 = vld [vmem:[#allocation2 + $0x129] sm:$0xff]
      %v565 = vld [vmem:[#allocation2 + $0x139] sm:$0xff]
      %v566 = vld [vmem:[#allocation2 + $0x141] sm:$0xff]
      %v567 = vld [vmem:[#allocation2 + $0x151] sm:$0xff]
      %v568 = vld [vmem:[#allocation2 + $0x159] sm:$0xff]
      %v569 = vld [vmem:[#allocation2 + $0x169] sm:$0xff]
      %v570 = vld [vmem:[#allocation2 + $0x171] sm:$0xff]
      %v571 = vperm.slane %v439, 1
      %v572 = vmul.f32 %v539, %v571
      %v573 = vmul.f32 %v540, %v571
      %v574 = vmul.f32 %v541, %v571
      %v575 = vmul.f32 %v542, %v571
      %v576 = vmul.f32 %v543, %v571
      %v577 = vmul.f32 %v544, %v571
      %v578 = vmul.f32 %v545, %v571
      %v579 = vmul.f32 %v546, %v571
      %v580 = vmul.f32 %v547, %v571
      %v581 = vmul.f32 %v548, %v571
      %v582 = vmul.f32 %v549, %v571
      %v583 = vmul.f32 %v550, %v571
      %v584 = vmul.f32 %v551, %v571
      %v585 = vmul.f32 %v552, %v571
      %v586 = vmul.f32 %v553, %v571
      %v587 = vmul.f32 %v554, %v571
      %v588 = vmul.f32 %v555, %v571
      %v589 = vmul.f32 %v556, %v571
      %v590 = vmul.f32 %v557, %v571
      %v591 = vmul.f32 %v558, %v571
      %v592 = vmul.f32 %v559, %v571
      %v593 = vmul.f32 %v560, %v571
      %v594 = vmul.f32 %v561, %v571
      %v595 = vmul.f32 %v562, %v571
      %v596 = vmul.f32 %v563, %v571
      %v597 = vmul.f32 %v564, %v571
      %v598 = vmul.f32 %v565, %v571
      %v599 = vmul.f32 %v566, %v571
      %v600 = vmul.f32 %v567, %v571
      %v601 = vmul.f32 %v568, %v571
      %v602 = vmul.f32 %v569, %v571
      %v603 = vmul.f32 %v570, %v571
      %v604 = vadd.f32 %v507, %v572
      %v605 = vadd.f32 %v508, %v573
      %v606 = vadd.f32 %v509, %v574
      %v607 = vadd.f32 %v510, %v575
      %v608 = vadd.f32 %v511, %v576
      %v609 = vadd.f32 %v512, %v577
      %v610 = vadd.f32 %v513, %v578
      %v611 = vadd.f32 %v514, %v579
      %v612 = vadd.f32 %v515, %v580
      %v613 = vadd.f32 %v516, %v581
      %v614 = vadd.f32 %v517, %v582
      %v615 = vadd.f32 %v518, %v583
      %v616 = vadd.f32 %v519, %v584
      %v617 = vadd.f32 %v520, %v585
      %v618 = vadd.f32 %v521, %v586
      %v619 = vadd.f32 %v522, %v587
      %v620 = vadd.f32 %v523, %v588
      %v621 = vadd.f32 %v524, %v589
      %v622 = vadd.f32 %v525, %v590
      %v623 = vadd.f32 %v526, %v591
      %v624 = vadd.f32 %v527, %v592
      %v625 = vadd.f32 %v528, %v593
      %v626 = vadd.f32 %v529, %v594
      %v627 = vadd.f32 %v530, %v595
      %v628 = vadd.f32 %v531, %v596
      %v629 = vadd.f32 %v532, %v597
      %v630 = vadd.f32 %v533, %v598
      %v631 = vadd.f32 %v534, %v599
      %v632 = vadd.f32 %v535, %v600
      %v633 = vadd.f32 %v536, %v601
      %v634 = vadd.f32 %v537, %v602
      %v635 = vadd.f32 %v538, %v603
      %v636 = vld [vmem:[#allocation2 + $0x2] sm:$0xff]
      %v637 = vld [vmem:[#allocation2 + $0xa] sm:$0xff]
      %v638 = vld [vmem:[#allocation2 + $0x1a] sm:$0xff]
      %v639 = vld [vmem:[#allocation2 + $0x22] sm:$0xff]
      %v640 = vld [vmem:[#allocation2 + $0x32] sm:$0xff]
      %v641 = vld [vmem:[#allocation2 + $0x3a] sm:$0xff]
      %v642 = vld [vmem:[#allocation2 + $0x4a] sm:$0xff]
      %v643 = vld [vmem:[#allocation2 + $0x52] sm:$0xff]
      %v644 = vld [vmem:[#allocation2 + $0x62] sm:$0xff]
      %v645 = vld [vmem:[#allocation2 + $0x6a] sm:$0xff]
      %v646 = vld [vmem:[#allocation2 + $0x7a] sm:$0xff]
      %v647 = vld [vmem:[#allocation2 + $0x82] sm:$0xff]
      %v648 = vld [vmem:[#allocation2 + $0x92] sm:$0xff]
      %v649 = vld [vmem:[#allocation2 + $0x9a] sm:$0xff]
      %v650 = vld [vmem:[#allocation2 + $0xaa] sm:$0xff]
      %v651 = vld [vmem:[#allocation2 + $0xb2] sm:$0xff]
      %v652 = vld [vmem:[#allocation2 + $0xc2] sm:$0xff]
      %v653 = vld [vmem:[#allocation2 + $0xca] sm:$0xff]
      %v654 = vld [vmem:[#allocation2 + $0xda] sm:$0xff]
      %v655 = vld [vmem:[#allocation2 + $0xe2] sm:$0xff]
      %v656 = vld [vmem:[#allocation2 + $0xf2] sm:$0xff]
      %v657 = vld [vmem:[#allocation2 + $0xfa] sm:$0xff]
      %v658 = vld [vmem:[#allocation2 + $0x10a] sm:$0xff]
      %v659 = vld [vmem:[#allocation2 + $0x112] sm:$0xff]
      %v660 = vld [vmem:[#allocation2 + $0x122] sm:$0xff]
      %v661 = vld [vmem:[#allocation2 + $0x12a] sm:$0xff]
      %v662 = vld [vmem:[#allocation2 + $0x13a] sm:$0xff]
      %v663 = vld [vmem:[#allocation2 + $0x142] sm:$0xff]
      %v664 = vld [vmem:[#allocation2 + $0x152] sm:$0xff]
      %v665 = vld [vmem:[#allocation2 + $0x15a] sm:$0xff]
      %v666 = vld [vmem:[#allocation2 + $0x16a] sm:$0xff]
      %v667 = vld [vmem:[#allocation2 + $0x172] sm:$0xff]
      %v668 = vperm.slane %v439, 2
      %v669 = vmul.f32 %v636, %v668
      %v670 = vmul.f32 %v637, %v668
      %v671 = vmul.f32 %v638, %v668
      %v672 = vmul.f32 %v639, %v668
      %v673 = vmul.f32 %v640, %v668
      %v674 = vmul.f32 %v641, %v668
      %v675 = vmul.f32 %v642, %v668
      %v676 = vmul.f32 %v643, %v668
      %v677 = vmul.f32 %v644, %v668
      %v678 = vmul.f32 %v645, %v668
      %v679 = vmul.f32 %v646, %v668
      %v680 = vmul.f32 %v647, %v668
      %v681 = vmul.f32 %v648, %v668
      %v682 = vmul.f32 %v649, %v668
      %v683 = vmul.f32 %v650, %v668
      %v684 = vmul.f32 %v651, %v668
      %v685 = vmul.f32 %v652, %v668
      %v686 = vmul.f32 %v653, %v668
      %v687 = vmul.f32 %v654, %v668
      %v688 = vmul.f32 %v655, %v668
      %v689 = vmul.f32 %v656, %v668
      %v690 = vmul.f32 %v657, %v668
      %v691 = vmul.f32 %v658, %v668
      %v692 = vmul.f32 %v659, %v668
      %v693 = vmul.f32 %v660, %v668
      %v694 = vmul.f32 %v661, %v668
      %v695 = vmul.f32 %v662, %v668
      %v696 = vmul.f32 %v663, %v668
      %v697 = vmul.f32 %v664, %v668
      %v698 = vmul.f32 %v665, %v668
      %v699 = vmul.f32 %v666, %v668
      %v700 = vmul.f32 %v667, %v668
      %v701 = vadd.f32 %v604, %v669
      %v702 = vadd.f32 %v605, %v670
      %v703 = vadd.f32 %v606, %v671
      %v704 = vadd.f32 %v607, %v672
      %v705 = vadd.f32 %v608, %v673
      %v706 = vadd.f32 %v609, %v674
      %v707 = vadd.f32 %v610, %v675
      %v708 = vadd.f32 %v611, %v676
      %v709 = vadd.f32 %v612, %v677
      %v710 = vadd.f32 %v613, %v678
      %v711 = vadd.f32 %v614, %v679
      %v712 = vadd.f32 %v615, %v680
      %v713 = vadd.f32 %v616, %v681
      %v714 = vadd.f32 %v617, %v682
      %v715 = vadd.f32 %v618, %v683
      %v716 = vadd.f32 %v619, %v684
      %v717 = vadd.f32 %v620, %v685
      %v718 = vadd.f32 %v621, %v686
      %v719 = vadd.f32 %v622, %v687
      %v720 = vadd.f32 %v623, %v688
      %v721 = vadd.f32 %v624, %v689
      %v722 = vadd.f32 %v625, %v690
      %v723 = vadd.f32 %v626, %v691
      %v724 = vadd.f32 %v627, %v692
      %v725 = vadd.f32 %v628, %v693
      %v726 = vadd.f32 %v629, %v694
      %v727 = vadd.f32 %v630, %v695
      %v728 = vadd.f32 %v631, %v696
      %v729 = vadd.f32 %v632, %v697
      %v730 = vadd.f32 %v633, %v698
      %v731 = vadd.f32 %v634, %v699
      %v732 = vadd.f32 %v635, %v700
      %s733 = scalar_lea.vmem [#allocation2], 24
      %v734 = vld [vmem:[%s733] sm:$0xff]
      %v735 = vld [vmem:[%s733 + $0x8] sm:$0xff]
      %v736 = vld [vmem:[%s733 + $0x18] sm:$0xff]
      %v737 = vld [vmem:[%s733 + $0x20] sm:$0xff]
      %v738 = vld [vmem:[%s733 + $0x30] sm:$0xff]
      %v739 = vld [vmem:[%s733 + $0x38] sm:$0xff]
      %v740 = vld [vmem:[%s733 + $0x48] sm:$0xff]
      %v741 = vld [vmem:[%s733 + $0x50] sm:$0xff]
      %v742 = vld [vmem:[%s733 + $0x60] sm:$0xff]
      %v743 = vld [vmem:[%s733 + $0x68] sm:$0xff]
      %v744 = vld [vmem:[%s733 + $0x78] sm:$0xff]
      %v745 = vld [vmem:[%s733 + $0x80] sm:$0xff]
      %v746 = vld [vmem:[%s733 + $0x90] sm:$0xff]
      %v747 = vld [vmem:[%s733 + $0x98] sm:$0xff]
      %v748 = vld [vmem:[%s733 + $0xa8] sm:$0xff]
      %v749 = vld [vmem:[%s733 + $0xb0] sm:$0xff]
      %v750 = vld [vmem:[%s733 + $0xc0] sm:$0xff]
      %v751 = vld [vmem:[%s733 + $0xc8] sm:$0xff]
      %v752 = vld [vmem:[%s733 + $0xd8] sm:$0xff]
      %v753 = vld [vmem:[%s733 + $0xe0] sm:$0xff]
      %v754 = vld [vmem:[%s733 + $0xf0] sm:$0xff]
      %v755 = vld [vmem:[%s733 + $0xf8] sm:$0xff]
      %v756 = vld [vmem:[%s733 + $0x108] sm:$0xff]
      %v757 = vld [vmem:[%s733 + $0x110] sm:$0xff]
      %v758 = vld [vmem:[%s733 + $0x120] sm:$0xff]
      %v759 = vld [vmem:[%s733 + $0x128] sm:$0xff]
      %v760 = vld [vmem:[%s733 + $0x138] sm:$0xff]
      %v761 = vld [vmem:[%s733 + $0x140] sm:$0xff]
      %v762 = vld [vmem:[%s733 + $0x150] sm:$0xff]
      %v763 = vld [vmem:[%s733 + $0x158] sm:$0xff]
      %v764 = vld [vmem:[%s733 + $0x168] sm:$0xff]
      %v765 = vld [vmem:[%s733 + $0x170] sm:$0xff]
      %v766 = vperm.slane %v440, 0
      %v767 = vmul.f32 %v734, %v766
      %v768 = vmul.f32 %v735, %v766
      %v769 = vmul.f32 %v736, %v766
      %v770 = vmul.f32 %v737, %v766
      %v771 = vmul.f32 %v738, %v766
      %v772 = vmul.f32 %v739, %v766
      %v773 = vmul.f32 %v740, %v766
      %v774 = vmul.f32 %v741, %v766
      %v775 = vmul.f32 %v742, %v766
      %v776 = vmul.f32 %v743, %v766
      %v777 = vmul.f32 %v744, %v766
      %v778 = vmul.f32 %v745, %v766
      %v779 = vmul.f32 %v746, %v766
      %v780 = vmul.f32 %v747, %v766
      %v781 = vmul.f32 %v748, %v766
      %v782 = vmul.f32 %v749, %v766
      %v783 = vmul.f32 %v750, %v766
      %v784 = vmul.f32 %v751, %v766
      %v785 = vmul.f32 %v752, %v766
      %v786 = vmul.f32 %v753, %v766
      %v787 = vmul.f32 %v754, %v766
      %v788 = vmul.f32 %v755, %v766
      %v789 = vmul.f32 %v756, %v766
      %v790 = vmul.f32 %v757, %v766
      %v791 = vmul.f32 %v758, %v766
      %v792 = vmul.f32 %v759, %v766
      %v793 = vmul.f32 %v760, %v766
      %v794 = vmul.f32 %v761, %v766
      %v795 = vmul.f32 %v762, %v766
      %v796 = vmul.f32 %v763, %v766
      %v797 = vmul.f32 %v764, %v766
      %v798 = vmul.f32 %v765, %v766
      %v799 = vadd.f32 %v701, %v767
      %v800 = vadd.f32 %v702, %v768
      %v801 = vadd.f32 %v703, %v769
      %v802 = vadd.f32 %v704, %v770
      %v803 = vadd.f32 %v705, %v771
      %v804 = vadd.f32 %v706, %v772
      %v805 = vadd.f32 %v707, %v773
      %v806 = vadd.f32 %v708, %v774
      %v807 = vadd.f32 %v709, %v775
      %v808 = vadd.f32 %v710, %v776
      %v809 = vadd.f32 %v711, %v777
      %v810 = vadd.f32 %v712, %v778
      %v811 = vadd.f32 %v713, %v779
      %v812 = vadd.f32 %v714, %v780
      %v813 = vadd.f32 %v715, %v781
      %v814 = vadd.f32 %v716, %v782
      %v815 = vadd.f32 %v717, %v783
      %v816 = vadd.f32 %v718, %v784
      %v817 = vadd.f32 %v719, %v785
      %v818 = vadd.f32 %v720, %v786
      %v819 = vadd.f32 %v721, %v787
      %v820 = vadd.f32 %v722, %v788
      %v821 = vadd.f32 %v723, %v789
      %v822 = vadd.f32 %v724, %v790
      %v823 = vadd.f32 %v725, %v791
      %v824 = vadd.f32 %v726, %v792
      %v825 = vadd.f32 %v727, %v793
      %v826 = vadd.f32 %v728, %v794
      %v827 = vadd.f32 %v729, %v795
      %v828 = vadd.f32 %v730, %v796
      %v829 = vadd.f32 %v731, %v797
      %v830 = vadd.f32 %v732, %v798
      %v831 = vld [vmem:[%s733 + $0x1] sm:$0xff]
      %v832 = vld [vmem:[%s733 + $0x9] sm:$0xff]
      %v833 = vld [vmem:[%s733 + $0x19] sm:$0xff]
      %v834 = vld [vmem:[%s733 + $0x21] sm:$0xff]
      %v835 = vld [vmem:[%s733 + $0x31] sm:$0xff]
      %v836 = vld [vmem:[%s733 + $0x39] sm:$0xff]
      %v837 = vld [vmem:[%s733 + $0x49] sm:$0xff]
      %v838 = vld [vmem:[%s733 + $0x51] sm:$0xff]
      %v839 = vld [vmem:[%s733 + $0x61] sm:$0xff]
      %v840 = vld [vmem:[%s733 + $0x69] sm:$0xff]
      %v841 = vld [vmem:[%s733 + $0x79] sm:$0xff]
      %v842 = vld [vmem:[%s733 + $0x81] sm:$0xff]
      %v843 = vld [vmem:[%s733 + $0x91] sm:$0xff]
      %v844 = vld [vmem:[%s733 + $0x99] sm:$0xff]
      %v845 = vld [vmem:[%s733 + $0xa9] sm:$0xff]
      %v846 = vld [vmem:[%s733 + $0xb1] sm:$0xff]
      %v847 = vld [vmem:[%s733 + $0xc1] sm:$0xff]
      %v848 = vld [vmem:[%s733 + $0xc9] sm:$0xff]
      %v849 = vld [vmem:[%s733 + $0xd9] sm:$0xff]
      %v850 = vld [vmem:[%s733 + $0xe1] sm:$0xff]
      %v851 = vld [vmem:[%s733 + $0xf1] sm:$0xff]
      %v852 = vld [vmem:[%s733 + $0xf9] sm:$0xff]
      %v853 = vld [vmem:[%s733 + $0x109] sm:$0xff]
      %v854 = vld [vmem:[%s733 + $0x111] sm:$0xff]
      %v855 = vld [vmem:[%s733 + $0x121] sm:$0xff]
      %v856 = vld [vmem:[%s733 + $0x129] sm:$0xff]
      %v857 = vld [vmem:[%s733 + $0x139] sm:$0xff]
      %v858 = vld [vmem:[%s733 + $0x141] sm:$0xff]
      %v859 = vld [vmem:[%s733 + $0x151] sm:$0xff]
      %v860 = vld [vmem:[%s733 + $0x159] sm:$0xff]
      %v861 = vld [vmem:[%s733 + $0x169] sm:$0xff]
      %v862 = vld [vmem:[%s733 + $0x171] sm:$0xff]
      %v863 = vperm.slane %v440, 1
      %v864 = vmul.f32 %v831, %v863
      %v865 = vmul.f32 %v832, %v863
      %v866 = vmul.f32 %v833, %v863
      %v867 = vmul.f32 %v834, %v863
      %v868 = vmul.f32 %v835, %v863
      %v869 = vmul.f32 %v836, %v863
      %v870 = vmul.f32 %v837, %v863
      %v871 = vmul.f32 %v838, %v863
      %v872 = vmul.f32 %v839, %v863
      %v873 = vmul.f32 %v840, %v863
      %v874 = vmul.f32 %v841, %v863
      %v875 = vmul.f32 %v842, %v863
      %v876 = vmul.f32 %v843, %v863
      %v877 = vmul.f32 %v844, %v863
      %v878 = vmul.f32 %v845, %v863
      %v879 = vmul.f32 %v846, %v863
      %v880 = vmul.f32 %v847, %v863
      %v881 = vmul.f32 %v848, %v863
      %v882 = vmul.f32 %v849, %v863
      %v883 = vmul.f32 %v850, %v863
      %v884 = vmul.f32 %v851, %v863
      %v885 = vmul.f32 %v852, %v863
      %v886 = vmul.f32 %v853, %v863
      %v887 = vmul.f32 %v854, %v863
      %v888 = vmul.f32 %v855, %v863
      %v889 = vmul.f32 %v856, %v863
      %v890 = vmul.f32 %v857, %v863
      %v891 = vmul.f32 %v858, %v863
      %v892 = vmul.f32 %v859, %v863
      %v893 = vmul.f32 %v860, %v863
      %v894 = vmul.f32 %v861, %v863
      %v895 = vmul.f32 %v862, %v863
      %v896 = vadd.f32 %v799, %v864
      %v897 = vadd.f32 %v800, %v865
      %v898 = vadd.f32 %v801, %v866
      %v899 = vadd.f32 %v802, %v867
      %v900 = vadd.f32 %v803, %v868
      %v901 = vadd.f32 %v804, %v869
      %v902 = vadd.f32 %v805, %v870
      %v903 = vadd.f32 %v806, %v871
      %v904 = vadd.f32 %v807, %v872
      %v905 = vadd.f32 %v808, %v873
      %v906 = vadd.f32 %v809, %v874
      %v907 = vadd.f32 %v810, %v875
      %v908 = vadd.f32 %v811, %v876
      %v909 = vadd.f32 %v812, %v877
      %v910 = vadd.f32 %v813, %v878
      %v911 = vadd.f32 %v814, %v879
      %v912 = vadd.f32 %v815, %v880
      %v913 = vadd.f32 %v816, %v881
      %v914 = vadd.f32 %v817, %v882
      %v915 = vadd.f32 %v818, %v883
      %v916 = vadd.f32 %v819, %v884
      %v917 = vadd.f32 %v820, %v885
      %v918 = vadd.f32 %v821, %v886
      %v919 = vadd.f32 %v822, %v887
      %v920 = vadd.f32 %v823, %v888
      %v921 = vadd.f32 %v824, %v889
      %v922 = vadd.f32 %v825, %v890
      %v923 = vadd.f32 %v826, %v891
      %v924 = vadd.f32 %v827, %v892
      %v925 = vadd.f32 %v828, %v893
      %v926 = vadd.f32 %v829, %v894
      %v927 = vadd.f32 %v830, %v895
      %v928 = vld [vmem:[%s733 + $0x2] sm:$0xff]
      %v929 = vld [vmem:[%s733 + $0xa] sm:$0xff]
      %v930 = vld [vmem:[%s733 + $0x1a] sm:$0xff]
      %v931 = vld [vmem:[%s733 + $0x22] sm:$0xff]
      %v932 = vld [vmem:[%s733 + $0x32] sm:$0xff]
      %v933 = vld [vmem:[%s733 + $0x3a] sm:$0xff]
      %v934 = vld [vmem:[%s733 + $0x4a] sm:$0xff]
      %v935 = vld [vmem:[%s733 + $0x52] sm:$0xff]
      %v936 = vld [vmem:[%s733 + $0x62] sm:$0xff]
      %v937 = vld [vmem:[%s733 + $0x6a] sm:$0xff]
      %v938 = vld [vmem:[%s733 + $0x7a] sm:$0xff]
      %v939 = vld [vmem:[%s733 + $0x82] sm:$0xff]
      %v940 = vld [vmem:[%s733 + $0x92] sm:$0xff]
      %v941 = vld [vmem:[%s733 + $0x9a] sm:$0xff]
      %v942 = vld [vmem:[%s733 + $0xaa] sm:$0xff]
      %v943 = vld [vmem:[%s733 + $0xb2] sm:$0xff]
      %v944 = vld [vmem:[%s733 + $0xc2] sm:$0xff]
      %v945 = vld [vmem:[%s733 + $0xca] sm:$0xff]
      %v946 = vld [vmem:[%s733 + $0xda] sm:$0xff]
      %v947 = vld [vmem:[%s733 + $0xe2] sm:$0xff]
      %v948 = vld [vmem:[%s733 + $0xf2] sm:$0xff]
      %v949 = vld [vmem:[%s733 + $0xfa] sm:$0xff]
      %v950 = vld [vmem:[%s733 + $0x10a] sm:$0xff]
      %v951 = vld [vmem:[%s733 + $0x112] sm:$0xff]
      %v952 = vld [vmem:[%s733 + $0x122] sm:$0xff]
      %v953 = vld [vmem:[%s733 + $0x12a] sm:$0xff]
      %v954 = vld [vmem:[%s733 + $0x13a] sm:$0xff]
      %v955 = vld [vmem:[%s733 + $0x142] sm:$0xff]
      %v956 = vld [vmem:[%s733 + $0x152] sm:$0xff]
      %v957 = vld [vmem:[%s733 + $0x15a] sm:$0xff]
      %v958 = vld [vmem:[%s733 + $0x16a] sm:$0xff]
      %v959 = vld [vmem:[%s733 + $0x172] sm:$0xff]
      %v960 = vperm.slane %v440, 2
      %v961 = vmul.f32 %v928, %v960
      %v962 = vmul.f32 %v929, %v960
      %v963 = vmul.f32 %v930, %v960
      %v964 = vmul.f32 %v931, %v960
      %v965 = vmul.f32 %v932, %v960
      %v966 = vmul.f32 %v933, %v960
      %v967 = vmul.f32 %v934, %v960
      %v968 = vmul.f32 %v935, %v960
      %v969 = vmul.f32 %v936, %v960
      %v970 = vmul.f32 %v937, %v960
      %v971 = vmul.f32 %v938, %v960
      %v972 = vmul.f32 %v939, %v960
      %v973 = vmul.f32 %v940, %v960
      %v974 = vmul.f32 %v941, %v960
      %v975 = vmul.f32 %v942, %v960
      %v976 = vmul.f32 %v943, %v960
      %v977 = vmul.f32 %v944, %v960
      %v978 = vmul.f32 %v945, %v960
      %v979 = vmul.f32 %v946, %v960
      %v980 = vmul.f32 %v947, %v960
      %v981 = vmul.f32 %v948, %v960
      %v982 = vmul.f32 %v949, %v960
      %v983 = vmul.f32 %v950, %v960
      %v984 = vmul.f32 %v951, %v960
      %v985 = vmul.f32 %v952, %v960
      %v986 = vmul.f32 %v953, %v960
      %v987 = vmul.f32 %v954, %v960
      %v988 = vmul.f32 %v955, %v960
      %v989 = vmul.f32 %v956, %v960
      %v990 = vmul.f32 %v957, %v960
      %v991 = vmul.f32 %v958, %v960
      %v992 = vmul.f32 %v959, %v960
      %v993 = vadd.f32 %v896, %v961
      %v994 = vadd.f32 %v897, %v962
      %v995 = vadd.f32 %v898, %v963
      %v996 = vadd.f32 %v899, %v964
      %v997 = vadd.f32 %v900, %v965
      %v998 = vadd.f32 %v901, %v966
      %v999 = vadd.f32 %v902, %v967
      %v1000 = vadd.f32 %v903, %v968
      %v1001 = vadd.f32 %v904, %v969
      %v1002 = vadd.f32 %v905, %v970
      %v1003 = vadd.f32 %v906, %v971
      %v1004 = vadd.f32 %v907, %v972
      %v1005 = vadd.f32 %v908, %v973
      %v1006 = vadd.f32 %v909, %v974
      %v1007 = vadd.f32 %v910, %v975
      %v1008 = vadd.f32 %v911, %v976
      %v1009 = vadd.f32 %v912, %v977
      %v1010 = vadd.f32 %v913, %v978
      %v1011 = vadd.f32 %v914, %v979
      %v1012 = vadd.f32 %v915, %v980
      %v1013 = vadd.f32 %v916, %v981
      %v1014 = vadd.f32 %v917, %v982
      %v1015 = vadd.f32 %v918, %v983
      %v1016 = vadd.f32 %v919, %v984
      %v1017 = vadd.f32 %v920, %v985
      %v1018 = vadd.f32 %v921, %v986
      %v1019 = vadd.f32 %v922, %v987
      %v1020 = vadd.f32 %v923, %v988
      %v1021 = vadd.f32 %v924, %v989
      %v1022 = vadd.f32 %v925, %v990
      %v1023 = vadd.f32 %v926, %v991
      %v1024 = vadd.f32 %v927, %v992
      %s1025 = scalar_lea.vmem [#allocation2], 48
      %v1026 = vld [vmem:[%s1025] sm:$0xff]
      %v1027 = vld [vmem:[%s1025 + $0x8] sm:$0xff]
      %v1028 = vld [vmem:[%s1025 + $0x18] sm:$0xff]
      %v1029 = vld [vmem:[%s1025 + $0x20] sm:$0xff]
      %v1030 = vld [vmem:[%s1025 + $0x30] sm:$0xff]
      %v1031 = vld [vmem:[%s1025 + $0x38] sm:$0xff]
      %v1032 = vld [vmem:[%s1025 + $0x48] sm:$0xff]
      %v1033 = vld [vmem:[%s1025 + $0x50] sm:$0xff]
      %v1034 = vld [vmem:[%s1025 + $0x60] sm:$0xff]
      %v1035 = vld [vmem:[%s1025 + $0x68] sm:$0xff]
      %v1036 = vld [vmem:[%s1025 + $0x78] sm:$0xff]
      %v1037 = vld [vmem:[%s1025 + $0x80] sm:$0xff]
      %v1038 = vld [vmem:[%s1025 + $0x90] sm:$0xff]
      %v1039 = vld [vmem:[%s1025 + $0x98] sm:$0xff]
      %v1040 = vld [vmem:[%s1025 + $0xa8] sm:$0xff]
      %v1041 = vld [vmem:[%s1025 + $0xb0] sm:$0xff]
      %v1042 = vld [vmem:[%s1025 + $0xc0] sm:$0xff]
      %v1043 = vld [vmem:[%s1025 + $0xc8] sm:$0xff]
      %v1044 = vld [vmem:[%s1025 + $0xd8] sm:$0xff]
      %v1045 = vld [vmem:[%s1025 + $0xe0] sm:$0xff]
      %v1046 = vld [vmem:[%s1025 + $0xf0] sm:$0xff]
      %v1047 = vld [vmem:[%s1025 + $0xf8] sm:$0xff]
      %v1048 = vld [vmem:[%s1025 + $0x108] sm:$0xff]
      %v1049 = vld [vmem:[%s1025 + $0x110] sm:$0xff]
      %v1050 = vld [vmem:[%s1025 + $0x120] sm:$0xff]
      %v1051 = vld [vmem:[%s1025 + $0x128] sm:$0xff]
      %v1052 = vld [vmem:[%s1025 + $0x138] sm:$0xff]
      %v1053 = vld [vmem:[%s1025 + $0x140] sm:$0xff]
      %v1054 = vld [vmem:[%s1025 + $0x150] sm:$0xff]
      %v1055 = vld [vmem:[%s1025 + $0x158] sm:$0xff]
      %v1056 = vld [vmem:[%s1025 + $0x168] sm:$0xff]
      %v1057 = vld [vmem:[%s1025 + $0x170] sm:$0xff]
      %v1058 = vperm.slane %v441, 0
      %v1059 = vmul.f32 %v1026, %v1058
      %v1060 = vmul.f32 %v1027, %v1058
      %v1061 = vmul.f32 %v1028, %v1058
      %v1062 = vmul.f32 %v1029, %v1058
      %v1063 = vmul.f32 %v1030, %v1058
      %v1064 = vmul.f32 %v1031, %v1058
      %v1065 = vmul.f32 %v1032, %v1058
      %v1066 = vmul.f32 %v1033, %v1058
      %v1067 = vmul.f32 %v1034, %v1058
      %v1068 = vmul.f32 %v1035, %v1058
      %v1069 = vmul.f32 %v1036, %v1058
      %v1070 = vmul.f32 %v1037, %v1058
      %v1071 = vmul.f32 %v1038, %v1058
      %v1072 = vmul.f32 %v1039, %v1058
      %v1073 = vmul.f32 %v1040, %v1058
      %v1074 = vmul.f32 %v1041, %v1058
      %v1075 = vmul.f32 %v1042, %v1058
      %v1076 = vmul.f32 %v1043, %v1058
      %v1077 = vmul.f32 %v1044, %v1058
      %v1078 = vmul.f32 %v1045, %v1058
      %v1079 = vmul.f32 %v1046, %v1058
      %v1080 = vmul.f32 %v1047, %v1058
      %v1081 = vmul.f32 %v1048, %v1058
      %v1082 = vmul.f32 %v1049, %v1058
      %v1083 = vmul.f32 %v1050, %v1058
      %v1084 = vmul.f32 %v1051, %v1058
      %v1085 = vmul.f32 %v1052, %v1058
      %v1086 = vmul.f32 %v1053, %v1058
      %v1087 = vmul.f32 %v1054, %v1058
      %v1088 = vmul.f32 %v1055, %v1058
      %v1089 = vmul.f32 %v1056, %v1058
      %v1090 = vmul.f32 %v1057, %v1058
      %v1091 = vadd.f32 %v993, %v1059
      %v1092 = vadd.f32 %v994, %v1060
      %v1093 = vadd.f32 %v995, %v1061
      %v1094 = vadd.f32 %v996, %v1062
      %v1095 = vadd.f32 %v997, %v1063
      %v1096 = vadd.f32 %v998, %v1064
      %v1097 = vadd.f32 %v999, %v1065
      %v1098 = vadd.f32 %v1000, %v1066
      %v1099 = vadd.f32 %v1001, %v1067
      %v1100 = vadd.f32 %v1002, %v1068
      %v1101 = vadd.f32 %v1003, %v1069
      %v1102 = vadd.f32 %v1004, %v1070
      %v1103 = vadd.f32 %v1005, %v1071
      %v1104 = vadd.f32 %v1006, %v1072
      %v1105 = vadd.f32 %v1007, %v1073
      %v1106 = vadd.f32 %v1008, %v1074
      %v1107 = vadd.f32 %v1009, %v1075
      %v1108 = vadd.f32 %v1010, %v1076
      %v1109 = vadd.f32 %v1011, %v1077
      %v1110 = vadd.f32 %v1012, %v1078
      %v1111 = vadd.f32 %v1013, %v1079
      %v1112 = vadd.f32 %v1014, %v1080
      %v1113 = vadd.f32 %v1015, %v1081
      %v1114 = vadd.f32 %v1016, %v1082
      %v1115 = vadd.f32 %v1017, %v1083
      %v1116 = vadd.f32 %v1018, %v1084
      %v1117 = vadd.f32 %v1019, %v1085
      %v1118 = vadd.f32 %v1020, %v1086
      %v1119 = vadd.f32 %v1021, %v1087
      %v1120 = vadd.f32 %v1022, %v1088
      %v1121 = vadd.f32 %v1023, %v1089
      %v1122 = vadd.f32 %v1024, %v1090
      %v1123 = vld [vmem:[%s1025 + $0x1] sm:$0xff]
      %v1124 = vld [vmem:[%s1025 + $0x9] sm:$0xff]
      %v1125 = vld [vmem:[%s1025 + $0x19] sm:$0xff]
      %v1126 = vld [vmem:[%s1025 + $0x21] sm:$0xff]
      %v1127 = vld [vmem:[%s1025 + $0x31] sm:$0xff]
      %v1128 = vld [vmem:[%s1025 + $0x39] sm:$0xff]
      %v1129 = vld [vmem:[%s1025 + $0x49] sm:$0xff]
      %v1130 = vld [vmem:[%s1025 + $0x51] sm:$0xff]
      %v1131 = vld [vmem:[%s1025 + $0x61] sm:$0xff]
      %v1132 = vld [vmem:[%s1025 + $0x69] sm:$0xff]
      %v1133 = vld [vmem:[%s1025 + $0x79] sm:$0xff]
      %v1134 = vld [vmem:[%s1025 + $0x81] sm:$0xff]
      %v1135 = vld [vmem:[%s1025 + $0x91] sm:$0xff]
      %v1136 = vld [vmem:[%s1025 + $0x99] sm:$0xff]
      %v1137 = vld [vmem:[%s1025 + $0xa9] sm:$0xff]
      %v1138 = vld [vmem:[%s1025 + $0xb1] sm:$0xff]
      %v1139 = vld [vmem:[%s1025 + $0xc1] sm:$0xff]
      %v1140 = vld [vmem:[%s1025 + $0xc9] sm:$0xff]
      %v1141 = vld [vmem:[%s1025 + $0xd9] sm:$0xff]
      %v1142 = vld [vmem:[%s1025 + $0xe1] sm:$0xff]
      %v1143 = vld [vmem:[%s1025 + $0xf1] sm:$0xff]
      %v1144 = vld [vmem:[%s1025 + $0xf9] sm:$0xff]
      %v1145 = vld [vmem:[%s1025 + $0x109] sm:$0xff]
      %v1146 = vld [vmem:[%s1025 + $0x111] sm:$0xff]
      %v1147 = vld [vmem:[%s1025 + $0x121] sm:$0xff]
      %v1148 = vld [vmem:[%s1025 + $0x129] sm:$0xff]
      %v1149 = vld [vmem:[%s1025 + $0x139] sm:$0xff]
      %v1150 = vld [vmem:[%s1025 + $0x141] sm:$0xff]
      %v1151 = vld [vmem:[%s1025 + $0x151] sm:$0xff]
      %v1152 = vld [vmem:[%s1025 + $0x159] sm:$0xff]
      %v1153 = vld [vmem:[%s1025 + $0x169] sm:$0xff]
      %v1154 = vld [vmem:[%s1025 + $0x171] sm:$0xff]
      %v1155 = vperm.slane %v441, 1
      %v1156 = vmul.f32 %v1123, %v1155
      %v1157 = vmul.f32 %v1124, %v1155
      %v1158 = vmul.f32 %v1125, %v1155
      %v1159 = vmul.f32 %v1126, %v1155
      %v1160 = vmul.f32 %v1127, %v1155
      %v1161 = vmul.f32 %v1128, %v1155
      %v1162 = vmul.f32 %v1129, %v1155
      %v1163 = vmul.f32 %v1130, %v1155
      %v1164 = vmul.f32 %v1131, %v1155
      %v1165 = vmul.f32 %v1132, %v1155
      %v1166 = vmul.f32 %v1133, %v1155
      %v1167 = vmul.f32 %v1134, %v1155
      %v1168 = vmul.f32 %v1135, %v1155
      %v1169 = vmul.f32 %v1136, %v1155
      %v1170 = vmul.f32 %v1137, %v1155
      %v1171 = vmul.f32 %v1138, %v1155
      %v1172 = vmul.f32 %v1139, %v1155
      %v1173 = vmul.f32 %v1140, %v1155
      %v1174 = vmul.f32 %v1141, %v1155
      %v1175 = vmul.f32 %v1142, %v1155
      %v1176 = vmul.f32 %v1143, %v1155
      %v1177 = vmul.f32 %v1144, %v1155
      %v1178 = vmul.f32 %v1145, %v1155
      %v1179 = vmul.f32 %v1146, %v1155
      %v1180 = vmul.f32 %v1147, %v1155
      %v1181 = vmul.f32 %v1148, %v1155
      %v1182 = vmul.f32 %v1149, %v1155
      %v1183 = vmul.f32 %v1150, %v1155
      %v1184 = vmul.f32 %v1151, %v1155
      %v1185 = vmul.f32 %v1152, %v1155
      %v1186 = vmul.f32 %v1153, %v1155
      %v1187 = vmul.f32 %v1154, %v1155
      %v1188 = vadd.f32 %v1091, %v1156
      %v1189 = vadd.f32 %v1092, %v1157
      %v1190 = vadd.f32 %v1093, %v1158
      %v1191 = vadd.f32 %v1094, %v1159
      %v1192 = vadd.f32 %v1095, %v1160
      %v1193 = vadd.f32 %v1096, %v1161
      %v1194 = vadd.f32 %v1097, %v1162
      %v1195 = vadd.f32 %v1098, %v1163
      %v1196 = vadd.f32 %v1099, %v1164
      %v1197 = vadd.f32 %v1100, %v1165
      %v1198 = vadd.f32 %v1101, %v1166
      %v1199 = vadd.f32 %v1102, %v1167
      %v1200 = vadd.f32 %v1103, %v1168
      %v1201 = vadd.f32 %v1104, %v1169
      %v1202 = vadd.f32 %v1105, %v1170
      %v1203 = vadd.f32 %v1106, %v1171
      %v1204 = vadd.f32 %v1107, %v1172
      %v1205 = vadd.f32 %v1108, %v1173
      %v1206 = vadd.f32 %v1109, %v1174
      %v1207 = vadd.f32 %v1110, %v1175
      %v1208 = vadd.f32 %v1111, %v1176
      %v1209 = vadd.f32 %v1112, %v1177
      %v1210 = vadd.f32 %v1113, %v1178
      %v1211 = vadd.f32 %v1114, %v1179
      %v1212 = vadd.f32 %v1115, %v1180
      %v1213 = vadd.f32 %v1116, %v1181
      %v1214 = vadd.f32 %v1117, %v1182
      %v1215 = vadd.f32 %v1118, %v1183
      %v1216 = vadd.f32 %v1119, %v1184
      %v1217 = vadd.f32 %v1120, %v1185
      %v1218 = vadd.f32 %v1121, %v1186
      %v1219 = vadd.f32 %v1122, %v1187
      %v1220 = vld [vmem:[%s1025 + $0x2] sm:$0xff]
      %v1221 = vld [vmem:[%s1025 + $0xa] sm:$0xff]
      %v1222 = vld [vmem:[%s1025 + $0x1a] sm:$0xff]
      %v1223 = vld [vmem:[%s1025 + $0x22] sm:$0xff]
      %v1224 = vld [vmem:[%s1025 + $0x32] sm:$0xff]
      %v1225 = vld [vmem:[%s1025 + $0x3a] sm:$0xff]
      %v1226 = vld [vmem:[%s1025 + $0x4a] sm:$0xff]
      %v1227 = vld [vmem:[%s1025 + $0x52] sm:$0xff]
      %v1228 = vld [vmem:[%s1025 + $0x62] sm:$0xff]
      %v1229 = vld [vmem:[%s1025 + $0x6a] sm:$0xff]
      %v1230 = vld [vmem:[%s1025 + $0x7a] sm:$0xff]
      %v1231 = vld [vmem:[%s1025 + $0x82] sm:$0xff]
      %v1232 = vld [vmem:[%s1025 + $0x92] sm:$0xff]
      %v1233 = vld [vmem:[%s1025 + $0x9a] sm:$0xff]
      %v1234 = vld [vmem:[%s1025 + $0xaa] sm:$0xff]
      %v1235 = vld [vmem:[%s1025 + $0xb2] sm:$0xff]
      %v1236 = vld [vmem:[%s1025 + $0xc2] sm:$0xff]
      %v1237 = vld [vmem:[%s1025 + $0xca] sm:$0xff]
      %v1238 = vld [vmem:[%s1025 + $0xda] sm:$0xff]
      %v1239 = vld [vmem:[%s1025 + $0xe2] sm:$0xff]
      %v1240 = vld [vmem:[%s1025 + $0xf2] sm:$0xff]
      %v1241 = vld [vmem:[%s1025 + $0xfa] sm:$0xff]
      %v1242 = vld [vmem:[%s1025 + $0x10a] sm:$0xff]
      %v1243 = vld [vmem:[%s1025 + $0x112] sm:$0xff]
      %v1244 = vld [vmem:[%s1025 + $0x122] sm:$0xff]
      %v1245 = vld [vmem:[%s1025 + $0x12a] sm:$0xff]
      %v1246 = vld [vmem:[%s1025 + $0x13a] sm:$0xff]
      %v1247 = vld [vmem:[%s1025 + $0x142] sm:$0xff]
      %v1248 = vld [vmem:[%s1025 + $0x152] sm:$0xff]
      %v1249 = vld [vmem:[%s1025 + $0x15a] sm:$0xff]
      %v1250 = vld [vmem:[%s1025 + $0x16a] sm:$0xff]
      %v1251 = vld [vmem:[%s1025 + $0x172] sm:$0xff]
      %v1252 = vperm.slane %v441, 2
      %v1253 = vmul.f32 %v1220, %v1252
      %v1254 = vmul.f32 %v1221, %v1252
      %v1255 = vmul.f32 %v1222, %v1252
      %v1256 = vmul.f32 %v1223, %v1252
      %v1257 = vmul.f32 %v1224, %v1252
      %v1258 = vmul.f32 %v1225, %v1252
      %v1259 = vmul.f32 %v1226, %v1252
      %v1260 = vmul.f32 %v1227, %v1252
      %v1261 = vmul.f32 %v1228, %v1252
      %v1262 = vmul.f32 %v1229, %v1252
      %v1263 = vmul.f32 %v1230, %v1252
      %v1264 = vmul.f32 %v1231, %v1252
      %v1265 = vmul.f32 %v1232, %v1252
      %v1266 = vmul.f32 %v1233, %v1252
      %v1267 = vmul.f32 %v1234, %v1252
      %v1268 = vmul.f32 %v1235, %v1252
      %v1269 = vmul.f32 %v1236, %v1252
      %v1270 = vmul.f32 %v1237, %v1252
      %v1271 = vmul.f32 %v1238, %v1252
      %v1272 = vmul.f32 %v1239, %v1252
      %v1273 = vmul.f32 %v1240, %v1252
      %v1274 = vmul.f32 %v1241, %v1252
      %v1275 = vmul.f32 %v1242, %v1252
      %v1276 = vmul.f32 %v1243, %v1252
      %v1277 = vmul.f32 %v1244, %v1252
      %v1278 = vmul.f32 %v1245, %v1252
      %v1279 = vmul.f32 %v1246, %v1252
      %v1280 = vmul.f32 %v1247, %v1252
      %v1281 = vmul.f32 %v1248, %v1252
      %v1282 = vmul.f32 %v1249, %v1252
      %v1283 = vmul.f32 %v1250, %v1252
      %v1284 = vmul.f32 %v1251, %v1252
      %v1285 = vadd.f32 %v1188, %v1253
      %v1286 = vadd.f32 %v1189, %v1254
      %v1287 = vadd.f32 %v1190, %v1255
      %v1288 = vadd.f32 %v1191, %v1256
      %v1289 = vadd.f32 %v1192, %v1257
      %v1290 = vadd.f32 %v1193, %v1258
      %v1291 = vadd.f32 %v1194, %v1259
      %v1292 = vadd.f32 %v1195, %v1260
      %v1293 = vadd.f32 %v1196, %v1261
      %v1294 = vadd.f32 %v1197, %v1262
      %v1295 = vadd.f32 %v1198, %v1263
      %v1296 = vadd.f32 %v1199, %v1264
      %v1297 = vadd.f32 %v1200, %v1265
      %v1298 = vadd.f32 %v1201, %v1266
      %v1299 = vadd.f32 %v1202, %v1267
      %v1300 = vadd.f32 %v1203, %v1268
      %v1301 = vadd.f32 %v1204, %v1269
      %v1302 = vadd.f32 %v1205, %v1270
      %v1303 = vadd.f32 %v1206, %v1271
      %v1304 = vadd.f32 %v1207, %v1272
      %v1305 = vadd.f32 %v1208, %v1273
      %v1306 = vadd.f32 %v1209, %v1274
      %v1307 = vadd.f32 %v1210, %v1275
      %v1308 = vadd.f32 %v1211, %v1276
      %v1309 = vadd.f32 %v1212, %v1277
      %v1310 = vadd.f32 %v1213, %v1278
      %v1311 = vadd.f32 %v1214, %v1279
      %v1312 = vadd.f32 %v1215, %v1280
      %v1313 = vadd.f32 %v1216, %v1281
      %v1314 = vadd.f32 %v1217, %v1282
      %v1315 = vadd.f32 %v1218, %v1283
      %v1316 = vadd.f32 %v1219, %v1284
      %v1317 = vsel %vm376, %v1285, 0.0
      %v1318 = vsel %vm376, %v1286, 0.0
      %v1319 = vsel %vm376, %v1287, 0.0
      %v1320 = vsel %vm376, %v1288, 0.0
      %v1321 = vsel %vm376, %v1289, 0.0
      %v1322 = vsel %vm376, %v1290, 0.0
      %v1323 = vsel %vm376, %v1291, 0.0
      %v1324 = vsel %vm376, %v1292, 0.0
      %v1325 = vsel %vm376, %v1293, 0.0
      %v1326 = vsel %vm376, %v1294, 0.0
      %v1327 = vsel %vm376, %v1295, 0.0
      %v1328 = vsel %vm376, %v1296, 0.0
      %v1329 = vsel %vm376, %v1297, 0.0
      %v1330 = vsel %vm376, %v1298, 0.0
      %v1331 = vsel %vm376, %v1299, 0.0
      %v1332 = vsel %vm376, %v1300, 0.0
      %v1333 = vsel %vm376, %v1301, 0.0
      %v1334 = vsel %vm376, %v1302, 0.0
      %v1335 = vsel %vm376, %v1303, 0.0
      %v1336 = vsel %vm376, %v1304, 0.0
      %v1337 = vsel %vm376, %v1305, 0.0
      %v1338 = vsel %vm376, %v1306, 0.0
      %v1339 = vsel %vm376, %v1307, 0.0
      %v1340 = vsel %vm376, %v1308, 0.0
      %v1341 = vsel %vm376, %v1309, 0.0
      %v1342 = vsel %vm376, %v1310, 0.0
      %v1343 = vsel %vm376, %v1311, 0.0
      %v1344 = vsel %vm376, %v1312, 0.0
      %v1345 = vsel %vm376, %v1313, 0.0
      %v1346 = vsel %vm376, %v1314, 0.0
      %v1347 = vsel %vm376, %v1315, 0.0
      %v1348 = vsel %vm376, %v1316, 0.0
      %v1349 = vld [vmem:[%s3] sm:$0xff]
      %v1350 = vld [vmem:[%s3 + $0x8] sm:$0xff]
      %v1351 = vld [vmem:[%s3 + $0x10] sm:$0xff]
      %v1352 = vld [vmem:[%s3 + $0x18] sm:$0xff]
      %v1353 = vld [vmem:[%s3 + $0x20] sm:$0xff]
      %v1354 = vld [vmem:[%s3 + $0x28] sm:$0xff]
      %v1355 = vld [vmem:[%s3 + $0x30] sm:$0xff]
      %v1356 = vld [vmem:[%s3 + $0x38] sm:$0xff]
      %v1357 = vld [vmem:[%s3 + $0x40] sm:$0xff]
      %v1358 = vld [vmem:[%s3 + $0x48] sm:$0xff]
      %v1359 = vld [vmem:[%s3 + $0x50] sm:$0xff]
      %v1360 = vld [vmem:[%s3 + $0x58] sm:$0xff]
      %v1361 = vld [vmem:[%s3 + $0x60] sm:$0xff]
      %v1362 = vld [vmem:[%s3 + $0x68] sm:$0xff]
      %v1363 = vld [vmem:[%s3 + $0x70] sm:$0xff]
      %v1364 = vld [vmem:[%s3 + $0x78] sm:$0xff]
      %1365 = vmatpush.msra.mxu0 %v1364
      %1366 = vmatpush.msra.mxu0 %v1363
      %1367 = vmatpush.msra.mxu0 %v1362
      %1368 = vmatpush.msra.mxu0 %v1361
      %1369 = vmatpush.msra.mxu0 %v1360
      %1370 = vmatpush.msra.mxu0 %v1359
      %1371 = vmatpush.msra.mxu0 %v1358
      %1372 = vmatpush.msra.mxu0 %v1357
      %1373 = vmatpush.msra.mxu0 %v1356
      %1374 = vmatpush.msra.mxu0 %v1355
      %1375 = vmatpush.msra.mxu0 %v1354
      %1376 = vmatpush.msra.mxu0 %v1353
      %1377 = vmatpush.msra.mxu0 %v1352
      %1378 = vmatpush.msra.mxu0 %v1351
      %1379 = vmatpush.msra.mxu0 %v1350
      %1380 = vmatpush.msra.mxu0 %v1349
      %1381 = vmatmul.f32.gmra.mxu0 %v1317
      %v1382 = vpop.f32.mrf.mxu0
      %v1383 = vadd.f32 0.0, %v1382
      %1384 = vmatmul.f32.gmra.mxu0 %v1318
      %v1385 = vpop.f32.mrf.mxu0
      %v1386 = vadd.f32 0.0, %v1385
      %1387 = vmatmul.f32.gmra.mxu0 %v1319
      %v1388 = vpop.f32.mrf.mxu0
      %v1389 = vadd.f32 0.0, %v1388
      %1390 = vmatmul.f32.gmra.mxu0 %v1320
      %v1391 = vpop.f32.mrf.mxu0
      %v1392 = vadd.f32 0.0, %v1391
      %1393 = vmatmul.f32.gmra.mxu0 %v1321
      %v1394 = vpop.f32.mrf.mxu0
      %v1395 = vadd.f32 0.0, %v1394
      %1396 = vmatmul.f32.gmra.mxu0 %v1322
      %v1397 = vpop.f32.mrf.mxu0
      %v1398 = vadd.f32 0.0, %v1397
      %1399 = vmatmul.f32.gmra.mxu0 %v1323
      %v1400 = vpop.f32.mrf.mxu0
      %v1401 = vadd.f32 0.0, %v1400
      %1402 = vmatmul.f32.gmra.mxu0 %v1324
      %v1403 = vpop.f32.mrf.mxu0
      %v1404 = vadd.f32 0.0, %v1403
      %1405 = vmatmul.f32.gmra.mxu0 %v1325
      %v1406 = vpop.f32.mrf.mxu0
      %v1407 = vadd.f32 0.0, %v1406
      %1408 = vmatmul.f32.gmra.mxu0 %v1326
      %v1409 = vpop.f32.mrf.mxu0
      %v1410 = vadd.f32 0.0, %v1409
      %1411 = vmatmul.f32.gmra.mxu0 %v1327
      %v1412 = vpop.f32.mrf.mxu0
      %v1413 = vadd.f32 0.0, %v1412
      %1414 = vmatmul.f32.gmra.mxu0 %v1328
      %v1415 = vpop.f32.mrf.mxu0
      %v1416 = vadd.f32 0.0, %v1415
      %1417 = vmatmul.f32.gmra.mxu0 %v1329
      %v1418 = vpop.f32.mrf.mxu0
      %v1419 = vadd.f32 0.0, %v1418
      %1420 = vmatmul.f32.gmra.mxu0 %v1330
      %v1421 = vpop.f32.mrf.mxu0
      %v1422 = vadd.f32 0.0, %v1421
      %1423 = vmatmul.f32.gmra.mxu0 %v1331
      %v1424 = vpop.f32.mrf.mxu0
      %v1425 = vadd.f32 0.0, %v1424
      %1426 = vmatmul.f32.gmra.mxu0 %v1332
      %v1427 = vpop.f32.mrf.mxu0
      %v1428 = vadd.f32 0.0, %v1427
      %1429 = vmatmul.f32.gmra.mxu0 %v1333
      %v1430 = vpop.f32.mrf.mxu0
      %v1431 = vadd.f32 0.0, %v1430
      %1432 = vmatmul.f32.gmra.mxu0 %v1334
      %v1433 = vpop.f32.mrf.mxu0
      %v1434 = vadd.f32 0.0, %v1433
      %1435 = vmatmul.f32.gmra.mxu0 %v1335
      %v1436 = vpop.f32.mrf.mxu0
      %v1437 = vadd.f32 0.0, %v1436
      %1438 = vmatmul.f32.gmra.mxu0 %v1336
      %v1439 = vpop.f32.mrf.mxu0
      %v1440 = vadd.f32 0.0, %v1439
      %1441 = vmatmul.f32.gmra.mxu0 %v1337
      %v1442 = vpop.f32.mrf.mxu0
      %v1443 = vadd.f32 0.0, %v1442
      %1444 = vmatmul.f32.gmra.mxu0 %v1338
      %v1445 = vpop.f32.mrf.mxu0
      %v1446 = vadd.f32 0.0, %v1445
      %1447 = vmatmul.f32.gmra.mxu0 %v1339
      %v1448 = vpop.f32.mrf.mxu0
      %v1449 = vadd.f32 0.0, %v1448
      %1450 = vmatmul.f32.gmra.mxu0 %v1340
      %v1451 = vpop.f32.mrf.mxu0
      %v1452 = vadd.f32 0.0, %v1451
      %1453 = vmatmul.f32.gmra.mxu0 %v1341
      %v1454 = vpop.f32.mrf.mxu0
      %v1455 = vadd.f32 0.0, %v1454
      %1456 = vmatmul.f32.gmra.mxu0 %v1342
      %v1457 = vpop.f32.mrf.mxu0
      %v1458 = vadd.f32 0.0, %v1457
      %1459 = vmatmul.f32.gmra.mxu0 %v1343
      %v1460 = vpop.f32.mrf.mxu0
      %v1461 = vadd.f32 0.0, %v1460
      %1462 = vmatmul.f32.gmra.mxu0 %v1344
      %v1463 = vpop.f32.mrf.mxu0
      %v1464 = vadd.f32 0.0, %v1463
      %1465 = vmatmul.f32.gmra.mxu0 %v1345
      %v1466 = vpop.f32.mrf.mxu0
      %v1467 = vadd.f32 0.0, %v1466
      %1468 = vmatmul.f32.gmra.mxu0 %v1346
      %v1469 = vpop.f32.mrf.mxu0
      %v1470 = vadd.f32 0.0, %v1469
      %1471 = vmatmul.f32.gmra.mxu0 %v1347
      %v1472 = vpop.f32.mrf.mxu0
      %v1473 = vadd.f32 0.0, %v1472
      %1474 = vmatmul.f32.gmra.mxu0 %v1348
      %v1475 = vpop.f32.mrf.mxu0
      %v1476 = vadd.f32 0.0, %v1475
      %1477 = vdwg.mxu0
      %v1478 = vld [vmem:[%s4] sm:$0x7]
      %v1479 = vperm.slane %v1478, 0
      %v1480 = vmul.f32 %v1383, %v1479
      %v1481 = vmul.f32 %v1386, %v1479
      %v1482 = vmul.f32 %v1389, %v1479
      %v1483 = vmul.f32 %v1392, %v1479
      %v1484 = vmul.f32 %v1395, %v1479
      %v1485 = vmul.f32 %v1398, %v1479
      %v1486 = vmul.f32 %v1401, %v1479
      %v1487 = vmul.f32 %v1404, %v1479
      %v1488 = vmul.f32 %v1407, %v1479
      %v1489 = vmul.f32 %v1410, %v1479
      %v1490 = vmul.f32 %v1413, %v1479
      %v1491 = vmul.f32 %v1416, %v1479
      %v1492 = vmul.f32 %v1419, %v1479
      %v1493 = vmul.f32 %v1422, %v1479
      %v1494 = vmul.f32 %v1425, %v1479
      %v1495 = vmul.f32 %v1428, %v1479
      %v1496 = vmul.f32 %v1431, %v1479
      %v1497 = vmul.f32 %v1434, %v1479
      %v1498 = vmul.f32 %v1437, %v1479
      %v1499 = vmul.f32 %v1440, %v1479
      %v1500 = vmul.f32 %v1443, %v1479
      %v1501 = vmul.f32 %v1446, %v1479
      %v1502 = vmul.f32 %v1449, %v1479
      %v1503 = vmul.f32 %v1452, %v1479
      %v1504 = vmul.f32 %v1455, %v1479
      %v1505 = vmul.f32 %v1458, %v1479
      %v1506 = vmul.f32 %v1461, %v1479
      %v1507 = vmul.f32 %v1464, %v1479
      %v1508 = vmul.f32 %v1467, %v1479
      %v1509 = vmul.f32 %v1470, %v1479
      %v1510 = vmul.f32 %v1473, %v1479
      %v1511 = vmul.f32 %v1476, %v1479
      %v1512 = vperm.slane %v1478, 1
      %v1513 = vadd.f32 %v1480, %v1512
      %v1514 = vadd.f32 %v1481, %v1512
      %v1515 = vadd.f32 %v1482, %v1512
      %v1516 = vadd.f32 %v1483, %v1512
      %v1517 = vadd.f32 %v1484, %v1512
      %v1518 = vadd.f32 %v1485, %v1512
      %v1519 = vadd.f32 %v1486, %v1512
      %v1520 = vadd.f32 %v1487, %v1512
      %v1521 = vadd.f32 %v1488, %v1512
      %v1522 = vadd.f32 %v1489, %v1512
      %v1523 = vadd.f32 %v1490, %v1512
      %v1524 = vadd.f32 %v1491, %v1512
      %v1525 = vadd.f32 %v1492, %v1512
      %v1526 = vadd.f32 %v1493, %v1512
      %v1527 = vadd.f32 %v1494, %v1512
      %v1528 = vadd.f32 %v1495, %v1512
      %v1529 = vadd.f32 %v1496, %v1512
      %v1530 = vadd.f32 %v1497, %v1512
      %v1531 = vadd.f32 %v1498, %v1512
      %v1532 = vadd.f32 %v1499, %v1512
      %v1533 = vadd.f32 %v1500, %v1512
      %v1534 = vadd.f32 %v1501, %v1512
      %v1535 = vadd.f32 %v1502, %v1512
      %v1536 = vadd.f32 %v1503, %v1512
      %v1537 = vadd.f32 %v1504, %v1512
      %v1538 = vadd.f32 %v1505, %v1512
      %v1539 = vadd.f32 %v1506, %v1512
      %v1540 = vadd.f32 %v1507, %v1512
      %v1541 = vadd.f32 %v1508, %v1512
      %v1542 = vadd.f32 %v1509, %v1512
      %v1543 = vadd.f32 %v1510, %v1512
      %v1544 = vadd.f32 %v1511, %v1512
      %vm1545 = vcmp.gt.f32.partialorder %v1513, 0.0
      %vm1546 = vcmp.gt.f32.partialorder %v1514, 0.0
      %vm1547 = vcmp.gt.f32.partialorder %v1515, 0.0
      %vm1548 = vcmp.gt.f32.partialorder %v1516, 0.0
      %vm1549 = vcmp.gt.f32.partialorder %v1517, 0.0
      %vm1550 = vcmp.gt.f32.partialorder %v1518, 0.0
      %vm1551 = vcmp.gt.f32.partialorder %v1519, 0.0
      %vm1552 = vcmp.gt.f32.partialorder %v1520, 0.0
      %vm1553 = vcmp.gt.f32.partialorder %v1521, 0.0
      %vm1554 = vcmp.gt.f32.partialorder %v1522, 0.0
      %vm1555 = vcmp.gt.f32.partialorder %v1523, 0.0
      %vm1556 = vcmp.gt.f32.partialorder %v1524, 0.0
      %vm1557 = vcmp.gt.f32.partialorder %v1525, 0.0
      %vm1558 = vcmp.gt.f32.partialorder %v1526, 0.0
      %vm1559 = vcmp.gt.f32.partialorder %v1527, 0.0
      %vm1560 = vcmp.gt.f32.partialorder %v1528, 0.0
      %vm1561 = vcmp.gt.f32.partialorder %v1529, 0.0
      %vm1562 = vcmp.gt.f32.partialorder %v1530, 0.0
      %vm1563 = vcmp.gt.f32.partialorder %v1531, 0.0
      %vm1564 = vcmp.gt.f32.partialorder %v1532, 0.0
      %vm1565 = vcmp.gt.f32.partialorder %v1533, 0.0
      %vm1566 = vcmp.gt.f32.partialorder %v1534, 0.0
      %vm1567 = vcmp.gt.f32.partialorder %v1535, 0.0
      %vm1568 = vcmp.gt.f32.partialorder %v1536, 0.0
      %vm1569 = vcmp.gt.f32.partialorder %v1537, 0.0
      %vm1570 = vcmp.gt.f32.partialorder %v1538, 0.0
      %vm1571 = vcmp.gt.f32.partialorder %v1539, 0.0
      %vm1572 = vcmp.gt.f32.partialorder %v1540, 0.0
      %vm1573 = vcmp.gt.f32.partialorder %v1541, 0.0
      %vm1574 = vcmp.gt.f32.partialorder %v1542, 0.0
      %vm1575 = vcmp.gt.f32.partialorder %v1543, 0.0
      %vm1576 = vcmp.gt.f32.partialorder %v1544, 0.0
      %v1577 = vperm.slane %v1478, 2
      %v1578 = vmul.f32 %v1577, %v1513
      %v1579 = vmul.f32 %v1577, %v1514
      %v1580 = vmul.f32 %v1577, %v1515
      %v1581 = vmul.f32 %v1577, %v1516
      %v1582 = vmul.f32 %v1577, %v1517
      %v1583 = vmul.f32 %v1577, %v1518
      %v1584 = vmul.f32 %v1577, %v1519
      %v1585 = vmul.f32 %v1577, %v1520
      %v1586 = vmul.f32 %v1577, %v1521
      %v1587 = vmul.f32 %v1577, %v1522
      %v1588 = vmul.f32 %v1577, %v1523
      %v1589 = vmul.f32 %v1577, %v1524
      %v1590 = vmul.f32 %v1577, %v1525
      %v1591 = vmul.f32 %v1577, %v1526
      %v1592 = vmul.f32 %v1577, %v1527
      %v1593 = vmul.f32 %v1577, %v1528
      %v1594 = vmul.f32 %v1577, %v1529
      %v1595 = vmul.f32 %v1577, %v1530
      %v1596 = vmul.f32 %v1577, %v1531
      %v1597 = vmul.f32 %v1577, %v1532
      %v1598 = vmul.f32 %v1577, %v1533
      %v1599 = vmul.f32 %v1577, %v1534
      %v1600 = vmul.f32 %v1577, %v1535
      %v1601 = vmul.f32 %v1577, %v1536
      %v1602 = vmul.f32 %v1577, %v1537
      %v1603 = vmul.f32 %v1577, %v1538
      %v1604 = vmul.f32 %v1577, %v1539
      %v1605 = vmul.f32 %v1577, %v1540
      %v1606 = vmul.f32 %v1577, %v1541
      %v1607 = vmul.f32 %v1577, %v1542
      %v1608 = vmul.f32 %v1577, %v1543
      %v1609 = vmul.f32 %v1577, %v1544
      %v1610 = vsel %vm1545, %v1513, %v1578
      %v1611 = vsel %vm1546, %v1514, %v1579
      %v1612 = vsel %vm1547, %v1515, %v1580
      %v1613 = vsel %vm1548, %v1516, %v1581
      %v1614 = vsel %vm1549, %v1517, %v1582
      %v1615 = vsel %vm1550, %v1518, %v1583
      %v1616 = vsel %vm1551, %v1519, %v1584
      %v1617 = vsel %vm1552, %v1520, %v1585
      %v1618 = vsel %vm1553, %v1521, %v1586
      %v1619 = vsel %vm1554, %v1522, %v1587
      %v1620 = vsel %vm1555, %v1523, %v1588
      %v1621 = vsel %vm1556, %v1524, %v1589
      %v1622 = vsel %vm1557, %v1525, %v1590
      %v1623 = vsel %vm1558, %v1526, %v1591
      %v1624 = vsel %vm1559, %v1527, %v1592
      %v1625 = vsel %vm1560, %v1528, %v1593
      %v1626 = vsel %vm1561, %v1529, %v1594
      %v1627 = vsel %vm1562, %v1530, %v1595
      %v1628 = vsel %vm1563, %v1531, %v1596
      %v1629 = vsel %vm1564, %v1532, %v1597
      %v1630 = vsel %vm1565, %v1533, %v1598
      %v1631 = vsel %vm1566, %v1534, %v1599
      %v1632 = vsel %vm1567, %v1535, %v1600
      %v1633 = vsel %vm1568, %v1536, %v1601
      %v1634 = vsel %vm1569, %v1537, %v1602
      %v1635 = vsel %vm1570, %v1538, %v1603
      %v1636 = vsel %vm1571, %v1539, %v1604
      %v1637 = vsel %vm1572, %v1540, %v1605
      %v1638 = vsel %vm1573, %v1541, %v1606
      %v1639 = vsel %vm1574, %v1542, %v1607
      %v1640 = vsel %vm1575, %v1543, %v1608
      %v1641 = vsel %vm1576, %v1544, %v1609
      %vm1642 = vcmask 64512
      %1643 = vst.msk [vmem:[%s326] sm:$0xff] %vm1642, %v1610
      %1644 = vst.msk [vmem:[%s326 + $0x8] sm:$0xff] %vm1642, %v1611
      %1645 = vst.msk [vmem:[%s326 + $0x10] sm:$0xff] %vm1642, %v1612
      %1646 = vst.msk [vmem:[%s326 + $0x18] sm:$0xff] %vm1642, %v1613
      %1647 = vst.msk [vmem:[%s326 + $0x20] sm:$0xff] %vm1642, %v1614
      %1648 = vst.msk [vmem:[%s326 + $0x28] sm:$0xff] %vm1642, %v1615
      %1649 = vst.msk [vmem:[%s326 + $0x30] sm:$0xff] %vm1642, %v1616
      %1650 = vst.msk [vmem:[%s326 + $0x38] sm:$0xff] %vm1642, %v1617
      %1651 = vst.msk [vmem:[%s326 + $0x40] sm:$0xff] %vm1642, %v1618
      %1652 = vst.msk [vmem:[%s326 + $0x48] sm:$0xff] %vm1642, %v1619
      %1653 = vst.msk [vmem:[%s326 + $0x50] sm:$0xff] %vm1642, %v1620
      %1654 = vst.msk [vmem:[%s326 + $0x58] sm:$0xff] %vm1642, %v1621
      %1655 = vst.msk [vmem:[%s326 + $0x60] sm:$0xff] %vm1642, %v1622
      %1656 = vst.msk [vmem:[%s326 + $0x68] sm:$0xff] %vm1642, %v1623
      %1657 = vst.msk [vmem:[%s326 + $0x70] sm:$0xff] %vm1642, %v1624
      %1658 = vst.msk [vmem:[%s326 + $0x78] sm:$0xff] %vm1642, %v1625
      %1659 = vst.msk [vmem:[%s326 + $0x80] sm:$0xff] %vm1642, %v1626
      %1660 = vst.msk [vmem:[%s326 + $0x88] sm:$0xff] %vm1642, %v1627
      %1661 = vst.msk [vmem:[%s326 + $0x90] sm:$0xff] %vm1642, %v1628
      %1662 = vst.msk [vmem:[%s326 + $0x98] sm:$0xff] %vm1642, %v1629
      %1663 = vst.msk [vmem:[%s326 + $0xa0] sm:$0xff] %vm1642, %v1630
      %1664 = vst.msk [vmem:[%s326 + $0xa8] sm:$0xff] %vm1642, %v1631
      %1665 = vst.msk [vmem:[%s326 + $0xb0] sm:$0xff] %vm1642, %v1632
      %1666 = vst.msk [vmem:[%s326 + $0xb8] sm:$0xff] %vm1642, %v1633
      %1667 = vst.msk [vmem:[%s326 + $0xc0] sm:$0xff] %vm1642, %v1634
      %1668 = vst.msk [vmem:[%s326 + $0xc8] sm:$0xff] %vm1642, %v1635
      %1669 = vst.msk [vmem:[%s326 + $0xd0] sm:$0xff] %vm1642, %v1636
      %1670 = vst.msk [vmem:[%s326 + $0xd8] sm:$0xff] %vm1642, %v1637
      %1671 = vst.msk [vmem:[%s326 + $0xe0] sm:$0xff] %vm1642, %v1638
      %1672 = vst.msk [vmem:[%s326 + $0xe8] sm:$0xff] %vm1642, %v1639
      %1673 = vst.msk [vmem:[%s326 + $0xf0] sm:$0xff] %vm1642, %v1640
      %1674 = vst.msk [vmem:[%s326 + $0xf8] sm:$0xff] %vm1642, %v1641
      %s1675 = smul.u32 16, %s21
      %p1676 = scmp.lt.s32.totalorder %s20, 1
      %s1677 = scalar_select %p1676, %s20, 1
      %p1678 = scmp.lt.s32.totalorder %s1675, 15
      %s1679 = scalar_select %p1678, %s1675, 15
      %s1680 = smul.addr %s1679, 2
      %s1681 = smul.addr %s1677, 32
      %s1682 = sadd.s32 %s1680, %s1681
      %s1683 = smul.addr %s1682, 8
      %s1684 = scalar_lea.vmem %s5, %s1683
      // Predicated region
      $region41: #{tpu_custom_call.1} parent=39 // pred_check
        %p1685 = pneg %p167
      $region42: #{tpu_custom_call.1} parent=39 // pred_check_branch
        %1687 = sbr.rel (%p1685) target = $region44
      $region43: #{tpu_custom_call.1} parent=39 // pred_region
        %s1688 = smul.u32 16, %s21
      $region44: #{tpu_custom_call.1} parent=39 // pred_fallthru
        _
    $region40: #{tpu_custom_call.1} parent=5 // pred_fallthru
      _
    %p1689 = scmp.le.s32.totalorder 2, %s11
    // Predicated region
    $region45: #{tpu_custom_call.1} parent=5 // pred_check
      %p1690 = pneg %p1689
    $region46: #{tpu_custom_call.1} parent=5 // pred_check_branch
      %1692 = sbr.rel (%p1690) target = $region48
    $region47: #{tpu_custom_call.1} parent=5 // pred_region
      %s1693 = ssub.s32 %s11, 2
      // Predicated region
      $region49: #{tpu_custom_call.1} parent=47 // pred_check
        %p1694 = pneg %p173
      $region50: #{tpu_custom_call.1} parent=47 // pred_check_branch
        %1696 = sbr.rel (%p1694) target = $region52
      $region51: #{tpu_custom_call.1} parent=47 // pred_region
        %s1697 = smul.u32 16, %s23
        %p1698 = scmp.lt.s32.totalorder %s22, 1
        %s1699 = scalar_select %p1698, %s22, 1
        %p1700 = scmp.lt.s32.totalorder %s1697, 15
        %s1701 = scalar_select %p1700, %s1697, 15
        %s1702 = smul.addr %s1701, 2
        %s1703 = smul.addr %s1699, 32
        %s1704 = sadd.s32 %s1702, %s1703
        %s1705 = smul.addr %s1704, 8
        %s1706 = scalar_lea.vmem %s5, %s1705
      $region52: #{tpu_custom_call.1} parent=47 // pred_fallthru
        _
    $region48: #{tpu_custom_call.1} parent=5 // pred_fallthru
      _
  $region6: #{tpu_custom_call.1} parent=0 // loop_footer
    %s15 = sadd.s32 1, %s11
  $region7: #{tpu_custom_call.1} parent=0 // loop_footer_branch
    %10 = sbr.rel target = $region3
  $region8: #{tpu_custom_call.1} parent=0 // loop_exit
    _

</llo_original>
